<compile_context>
chip_gen: v7x
topology: tpu7x:2x2x1
jax: 0.10.0
libtpu: 0.0.40
codegen_flags: <defaults>
</compile_context>

<pallas_src>
import jax
import jax.numpy as jnp
import numpy as np
from jax.experimental import pallas as pl
from jax.experimental.pallas import tpu as pltpu


def _make_resconv_kernel(nb, H, WC, compute_dtype):
    """Kernel over one block of nb images: x (nb*H, WC) -> out (nb*H, WC)."""
    M = nb * H

    def kernel(x_ref, w1_ref, s1_ref, b1_ref, w2_ref, s2_ref, b2_ref, out_ref):
        x = x_ref[...]                                     # (M, WC) f32

        # Per-image H-padding masks: row p is the first/last row of its image.
        # Unrolled compares (nb is small & static) -- no vector int division.
        row = jax.lax.broadcasted_iota(jnp.int32, (M, WC), 0)
        is_first = row == 0
        is_last = row == (H - 1)
        for i in range(1, nb):
            is_first = jnp.logical_or(is_first, row == i * H)
            is_last = jnp.logical_or(is_last, row == i * H + H - 1)

        def band_input(a):
            # Row taps h-1 / h / h+1 via sublane rolls (XLU); the masks zero
            # the rows that fall into another image / the zero padding, which
            # is exactly the conv's H-direction 'SAME' padding.  Concatenate
            # on the lane axis -> (M, 3*WC) so each conv is ONE K=3*WC matmul
            # against the row-stacked banded weights.  Only the dot operand
            # is cast to the (bf16) compute dtype; everything else stays f32.
            up = jnp.where(is_first, 0.0, pltpu.roll(a, shift=1, axis=0))
            dn = jnp.where(is_last, 0.0, pltpu.roll(a, shift=M - 1, axis=0))
            return jnp.concatenate([up, a, dn], axis=1).astype(compute_dtype)

        # ---- conv1 + BN1 + ReLU (f32 accumulation / epilogue) -------------
        acc1 = jnp.dot(band_input(x), w1_ref[...],
                       preferred_element_type=jnp.float32)
        y = jnp.maximum(acc1 * s1_ref[...] + b1_ref[...], 0.0)

        # ---- conv2 + BN2 ---------------------------------------------------
        acc2 = jnp.dot(band_input(y), w2_ref[...],
                       preferred_element_type=jnp.float32)
        z = acc2 * s2_ref[...] + b2_ref[...]

        # ---- residual (f32 x) + final ReLU, lane-dense full-width store ----
        out_ref[...] = jnp.maximum(z + x, 0.0).astype(out_ref.dtype)

    return kernel


def _band_weights(w_hwio, W):
    """Fold the width-direction 3-tap conv (pad 1) into banded matrices.

    Returns (3, W*C, W*C) with
      B[kh][(w+kw-1)*C + ci, w*C + co] = w_hwio[kh, kw, ci, co]
    (zero where w+kw-1 lands in the width zero-padding), so that
      conv_out[h, :] = sum_kh xrow[h+kh-1, :] @ B[kh]
    on rows flattened as (W*C,) in w-major / c-minor order.
    """
    C = w_hwio.shape[-1]
    iw = np.arange(W)[:, None]          # input column
    ow = np.arange(W)[None, :]          # output column
    mats = []
    for kh in range(3):
        blk = jnp.zeros((W, C, W, C), jnp.float32)
        for kw in range(3):
            sel = jnp.asarray(iw == ow + kw - 1, jnp.float32)   # (W, W)
            blk = blk + (sel[:, None, :, None] *
                         w_hwio[kh, kw].astype(jnp.float32)[None, :, None, :])
        mats.append(blk.reshape(W * C, W * C))
    return jnp.stack(mats)


def resconv_pallas(x_nhwc, w1_hwio, s1, b1, w2_hwio, s2, b2,
                   compute_dtype=jnp.bfloat16, max_rows_per_block=256):
    """x_nhwc: (N,H,W,C) f32; w*: (3,3,C,C) HWIO; s*/b*: (C,) folded BN.

    compute_dtype only affects the matmul operands (bf16 default on all TPU
    generations); accumulation, BN/ReLU epilogue and the residual are f32.
    """
    N, H, W, C = x_nhwc.shape
    WC = W * C

    # Images per grid step: the largest divisor of N whose row count fits the
    # target M and keeps the block sublane-aligned; fall back to the whole
    # batch (block == full array is always a legal BlockSpec).
    nb = N
    for d in range(1, N + 1):
        if N % d == 0 and d * H <= max_rows_per_block and (d * H) % 8 == 0:
            nb = d
    M = nb * H
    grid = (N // nb,)

    # Free layout change only (no jnp.pad / crop HBM round trips); x stays f32.
    x2d = x_nhwc.reshape(N * H, WC).astype(jnp.float32)

    # Banded, row-stacked weights (3*WC, WC), shipped in the compute dtype
    # (bf16 by default -> half the dominant weight HBM traffic).
    wb1 = _band_weights(w1_hwio, W).reshape(3 * WC, WC).astype(compute_dtype)
    wb2 = _band_weights(w2_hwio, W).reshape(3 * WC, WC).astype(compute_dtype)

    # BN scale/bias tiled to lane width (element w*C + c gets value[c]), f32.
    s1t = jnp.tile(s1.astype(jnp.float32), W).reshape(1, WC)
    b1t = jnp.tile(b1.astype(jnp.float32), W).reshape(1, WC)
    s2t = jnp.tile(s2.astype(jnp.float32), W).reshape(1, WC)
    b2t = jnp.tile(b2.astype(jnp.float32), W).reshape(1, WC)

    kernel = _make_resconv_kernel(nb, H, WC, compute_dtype)

    def build(single_buffer_invariant):
        def inv(shape):
            # Grid-invariant inputs: constant index_map; single-buffer if the
            # running JAX supports pipeline_mode (VMEM saving, v7x-relevant).
            if single_buffer_invariant:
                return pl.BlockSpec(shape, lambda i: (0, 0),
                                    pipeline_mode=pl.Buffered(1))
            return pl.BlockSpec(shape, lambda i: (0, 0))

        return pl.pallas_call(
            kernel,
            out_shape=jax.ShapeDtypeStruct((N * H, WC), jnp.float32),
            grid_spec=pltpu.PrefetchScalarGridSpec(
                num_scalar_prefetch=0,
                grid=grid,
                in_specs=[
                    pl.BlockSpec((M, WC), lambda i: (i, 0)),   # x rows (f32)
                    inv((3 * WC, WC)),                         # banded w1
                    inv((1, WC)),                              # bn1 scale
                    inv((1, WC)),                              # bn1 bias
                    inv((3 * WC, WC)),                         # banded w2
                    inv((1, WC)),                              # bn2 scale
                    inv((1, WC)),                              # bn2 bias
                ],
                out_specs=pl.BlockSpec((M, WC), lambda i: (i, 0)),
            ),
            compiler_params=pltpu.CompilerParams(
                dimension_semantics=("parallel",)),  # shard steps across TCs
        )

    args = (x2d, wb1, s1t, b1t, wb2, s2t, b2t)
    if hasattr(pl, "Buffered"):
        try:
            out = jax.block_until_ready(build(True)(*args))
        except Exception:
            out = build(False)(*args)
    else:
        out = build(False)(*args)

    return out.reshape(N, H, W, C)


def resconv_ref(x_nhwc, w1, s1, b1, w2, s2, b2, compute_dtype=jnp.float32):
    """Pure-JAX reference (XLA convs) mirroring the kernel's dtype choices:
    compute_dtype conv operands, f32 accumulation/epilogue, f32 residual."""
    dn = jax.lax.conv_dimension_numbers(x_nhwc.shape, w1.shape,
                                        ('NHWC', 'HWIO', 'NHWC'))
    xc = x_nhwc.astype(compute_dtype)
    c1 = jax.lax.conv_general_dilated(
        xc, w1.astype(compute_dtype), (1, 1), 'SAME', dimension_numbers=dn,
        preferred_element_type=jnp.float32)
    y = jnp.maximum(c1 * s1.reshape(1, 1, 1, -1) + b1.reshape(1, 1, 1, -1), 0.0)
    c2 = jax.lax.conv_general_dilated(
        y.astype(compute_dtype), w2.astype(compute_dtype), (1, 1), 'SAME',
        dimension_numbers=dn, preferred_element_type=jnp.float32)
    z = c2 * s2.reshape(1, 1, 1, -1) + b2.reshape(1, 1, 1, -1)
    return jnp.maximum(z + x_nhwc.astype(jnp.float32), 0.0)


def _run_case(N, C, H, W, compute_dtype, max_rows_per_block, tol, seed=0):
    key = jax.random.PRNGKey(seed)
    ks = jax.random.split(key, 11)

    # activations: PyTorch NCHW -> kernel NHWC
    x_nchw = jax.random.normal(ks[0], (N, C, H, W), jnp.float32)
    x = jnp.transpose(x_nchw, (0, 2, 3, 1))

    # conv weights (PyTorch OIHW, no bias) -> HWIO
    w1_oihw = 0.2 * jax.random.normal(ks[1], (C, C, 3, 3), jnp.float32)
    w2_oihw = 0.2 * jax.random.normal(ks[2], (C, C, 3, 3), jnp.float32)
    w1 = jnp.transpose(w1_oihw, (2, 3, 1, 0))
    w2 = jnp.transpose(w2_oihw, (2, 3, 1, 0))

    # BatchNorm2d parameters folded to per-channel scale/bias (eval mode).
    eps = 1e-5

    def bn_fold(kg, kb, km, kv):
        gamma = 1.0 + 0.1 * jax.random.normal(kg, (C,), jnp.float32)
        beta = 0.1 * jax.random.normal(kb, (C,), jnp.float32)
        mean = 0.1 * jax.random.normal(km, (C,), jnp.float32)
        var = jnp.abs(jax.random.normal(kv, (C,), jnp.float32)) + 0.5
        scale = gamma * jax.lax.rsqrt(var + eps)
        bias = beta - mean * scale
        return scale, bias

    s1, b1 = bn_fold(ks[3], ks[4], ks[5], ks[6])
    s2, b2 = bn_fold(ks[7], ks[8], ks[9], ks[10])

    out = jax.block_until_ready(
        resconv_pallas(x, w1, s1, b1, w2, s2, b2,
                       compute_dtype=compute_dtype,
                       max_rows_per_block=max_rows_per_block))
    ref = resconv_ref(x, w1, s1, b1, w2, s2, b2, compute_dtype=compute_dtype)
    np.testing.assert_allclose(np.asarray(out), np.asarray(ref),
                               rtol=tol, atol=tol)


if __name__ == "__main__":
    # ResConv residual path requires in_channel == out_channel == C.
    # Config A: N=2, C=8, H=W=16 (WC=128), one grid step with M = N*H = 32.
    # 1) f32 matmul operands: strict check against the XLA conv reference.
    _run_case(N=2, C=8, H=16, W=16, compute_dtype=jnp.float32,
              max_rows_per_block=256, tol=1e-4)
    # 2) default bf16 matmul operands (all TPU generations), f32 epilogue and
    #    f32 residual; compared against a matching bf16-operand reference.
    _run_case(N=2, C=8, H=16, W=16, compute_dtype=jnp.bfloat16,
              max_rows_per_block=256, tol=2e-2)
    # Config B: exercises a multi-step grid (nb=2 -> grid=(2,)) so the
    # "parallel" batch axis and grid-invariant weight reuse are covered.
    _run_case(N=4, C=8, H=32, W=16, compute_dtype=jnp.bfloat16,
              max_rows_per_block=64, tol=2e-2)

    print("KERNEL_OK")
</pallas_src>

<mosaic_0001>
module attributes {stable_mosaic.version = 11 : i64} {
  func.func @kernel(%arg0: i32, %arg1: memref<32x128xf32, #tpu.memory_space<vmem>>, %arg2: memref<384x128xf32, #tpu.memory_space<vmem>>, %arg3: memref<1x128xf32, #tpu.memory_space<vmem>>, %arg4: memref<1x128xf32, #tpu.memory_space<vmem>>, %arg5: memref<384x128xf32, #tpu.memory_space<vmem>>, %arg6: memref<1x128xf32, #tpu.memory_space<vmem>>, %arg7: memref<1x128xf32, #tpu.memory_space<vmem>>, %arg8: memref<32x128xf32, #tpu.memory_space<vmem>>) attributes {dimension_semantics = [#tpu.dimension_semantics<parallel>], iteration_bounds = array<i64: 1>, scalar_prefetch = 0 : i64, scratch_operands = 0 : i64, tpu.core_type = #tpu.core_type<tc>, window_params = [{transform_indices = @transform_0, window_bounds = array<i64: 32, 128>}, {pipeline_mode = #tpu.pipeline_mode<synchronous>, transform_indices = @transform_1, window_bounds = array<i64: 384, 128>}, {pipeline_mode = #tpu.pipeline_mode<synchronous>, transform_indices = @transform_2, window_bounds = array<i64: 1, 128>}, {pipeline_mode = #tpu.pipeline_mode<synchronous>, transform_indices = @transform_3, window_bounds = array<i64: 1, 128>}, {pipeline_mode = #tpu.pipeline_mode<synchronous>, transform_indices = @transform_4, window_bounds = array<i64: 384, 128>}, {pipeline_mode = #tpu.pipeline_mode<synchronous>, transform_indices = @transform_5, window_bounds = array<i64: 1, 128>}, {pipeline_mode = #tpu.pipeline_mode<synchronous>, transform_indices = @transform_6, window_bounds = array<i64: 1, 128>}, {transform_indices = @transform_7, window_bounds = array<i64: 32, 128>}]} {
    %c0 = arith.constant 0 : index
    %c0_0 = arith.constant 0 : index
    %0 = vector.load %arg1[%c0, %c0_0] : memref<32x128xf32, #tpu.memory_space<vmem>>, vector<32x128xf32>
    %1 = tpu.iota {dimensions = array<i32: 0>} : vector<32x128xi32>
    %c0_i32 = arith.constant 0 : i32
    %2 = vector.broadcast %c0_i32 : i32 to vector<32x128xi32>
    %3 = arith.cmpi eq, %1, %2 : vector<32x128xi32>
    %c15_i32 = arith.constant 15 : i32
    %4 = vector.broadcast %c15_i32 : i32 to vector<32x128xi32>
    %5 = arith.cmpi eq, %1, %4 : vector<32x128xi32>
    %c16_i32 = arith.constant 16 : i32
    %6 = vector.broadcast %c16_i32 : i32 to vector<32x128xi32>
    %7 = arith.cmpi eq, %1, %6 : vector<32x128xi32>
    %8 = arith.ori %3, %7 : vector<32x128xi1>
    %c31_i32 = arith.constant 31 : i32
    %9 = vector.broadcast %c31_i32 : i32 to vector<32x128xi32>
    %10 = arith.cmpi eq, %1, %9 : vector<32x128xi32>
    %11 = arith.ori %5, %10 : vector<32x128xi1>
    %c1_i32 = arith.constant 1 : i32
    %12 = tpu.dynamic_rotate %0 by %c1_i32 dim 0 : vector<32x128xf32>, i32 -> vector<32x128xf32>
    %cst = arith.constant 0.000000e+00 : f32
    %13 = vector.broadcast %cst : f32 to vector<32x128xf32>
    %14 = arith.select %8, %13, %12 : vector<32x128xi1>, vector<32x128xf32>
    %c31_i32_1 = arith.constant 31 : i32
    %15 = tpu.dynamic_rotate %0 by %c31_i32_1 dim 0 : vector<32x128xf32>, i32 -> vector<32x128xf32>
    %cst_2 = arith.constant 0.000000e+00 : f32
    %16 = vector.broadcast %cst_2 : f32 to vector<32x128xf32>
    %17 = arith.select %11, %16, %15 : vector<32x128xi1>, vector<32x128xf32>
    %18 = tpu.concatenate %14, %0, %17 in 1 : vector<32x128xf32>, vector<32x128xf32>, vector<32x128xf32> -> vector<32x384xf32>
    %c0_3 = arith.constant 0 : index
    %c0_4 = arith.constant 0 : index
    %19 = vector.load %arg2[%c0_3, %c0_4] : memref<384x128xf32, #tpu.memory_space<vmem>>, vector<384x128xf32>
    %cst_5 = arith.constant dense<0.000000e+00> : vector<32x128xf32>
    %20 = tpu.matmul %18, %19, %cst_5 {dimension_numbers = #tpu.dot_dimension_numbers<[1], [0], [0], [1], [0, 0, 1, 1], [], []>} : vector<32x384xf32>, vector<384x128xf32>, vector<32x128xf32> -> vector<32x128xf32>
    %c0_6 = arith.constant 0 : index
    %c0_7 = arith.constant 0 : index
    %21 = vector.load %arg3[%c0_6, %c0_7] : memref<1x128xf32, #tpu.memory_space<vmem>>, vector<1x128xf32>
    %22 = vector.broadcast %21 : vector<1x128xf32> to vector<32x128xf32>
    %23 = arith.mulf %20, %22 : vector<32x128xf32>
    %c0_8 = arith.constant 0 : index
    %c0_9 = arith.constant 0 : index
    %24 = vector.load %arg4[%c0_8, %c0_9] : memref<1x128xf32, #tpu.memory_space<vmem>>, vector<1x128xf32>
    %25 = vector.broadcast %24 : vector<1x128xf32> to vector<32x128xf32>
    %26 = arith.addf %23, %25 : vector<32x128xf32>
    %cst_10 = arith.constant 0.000000e+00 : f32
    %27 = vector.broadcast %cst_10 : f32 to vector<32x128xf32>
    %28 = arith.maximumf %26, %27 : vector<32x128xf32>
    %c1_i32_11 = arith.constant 1 : i32
    %29 = tpu.dynamic_rotate %28 by %c1_i32_11 dim 0 : vector<32x128xf32>, i32 -> vector<32x128xf32>
    %cst_12 = arith.constant 0.000000e+00 : f32
    %30 = vector.broadcast %cst_12 : f32 to vector<32x128xf32>
    %31 = arith.select %8, %30, %29 : vector<32x128xi1>, vector<32x128xf32>
    %c31_i32_13 = arith.constant 31 : i32
    %32 = tpu.dynamic_rotate %28 by %c31_i32_13 dim 0 : vector<32x128xf32>, i32 -> vector<32x128xf32>
    %cst_14 = arith.constant 0.000000e+00 : f32
    %33 = vector.broadcast %cst_14 : f32 to vector<32x128xf32>
    %34 = arith.select %11, %33, %32 : vector<32x128xi1>, vector<32x128xf32>
    %35 = tpu.concatenate %31, %28, %34 in 1 : vector<32x128xf32>, vector<32x128xf32>, vector<32x128xf32> -> vector<32x384xf32>
    %c0_15 = arith.constant 0 : index
    %c0_16 = arith.constant 0 : index
    %36 = vector.load %arg5[%c0_15, %c0_16] : memref<384x128xf32, #tpu.memory_space<vmem>>, vector<384x128xf32>
    %cst_17 = arith.constant dense<0.000000e+00> : vector<32x128xf32>
    %37 = tpu.matmul %35, %36, %cst_17 {dimension_numbers = #tpu.dot_dimension_numbers<[1], [0], [0], [1], [0, 0, 1, 1], [], []>} : vector<32x384xf32>, vector<384x128xf32>, vector<32x128xf32> -> vector<32x128xf32>
    %c0_18 = arith.constant 0 : index
    %c0_19 = arith.constant 0 : index
    %38 = vector.load %arg6[%c0_18, %c0_19] : memref<1x128xf32, #tpu.memory_space<vmem>>, vector<1x128xf32>
    %39 = vector.broadcast %38 : vector<1x128xf32> to vector<32x128xf32>
    %40 = arith.mulf %37, %39 : vector<32x128xf32>
    %c0_20 = arith.constant 0 : index
    %c0_21 = arith.constant 0 : index
    %41 = vector.load %arg7[%c0_20, %c0_21] : memref<1x128xf32, #tpu.memory_space<vmem>>, vector<1x128xf32>
    %42 = vector.broadcast %41 : vector<1x128xf32> to vector<32x128xf32>
    %43 = arith.addf %40, %42 : vector<32x128xf32>
    %44 = arith.addf %43, %0 : vector<32x128xf32>
    %cst_22 = arith.constant 0.000000e+00 : f32
    %45 = vector.broadcast %cst_22 : f32 to vector<32x128xf32>
    %46 = arith.maximumf %44, %45 : vector<32x128xf32>
    %c0_23 = arith.constant 0 : index
    %c0_24 = arith.constant 0 : index
    %47 = vector.load %arg8[%c0_23, %c0_24] : memref<32x128xf32, #tpu.memory_space<vmem>>, vector<32x128xf32>
    tpu.vector_store %arg8[%c0_23, %c0_24], %46 {strides = array<i32>} : memref<32x128xf32, #tpu.memory_space<vmem>>, vector<32x128xf32>,
    return
  }
  func.func @transform_0(%arg0: i32) -> (i32, i32) {
    %c0_i32 = arith.constant 0 : i32
    %c0_i32_0 = arith.constant 0 : i32
    return %arg0, %c0_i32 : i32, i32
  }
  func.func @transform_1(%arg0: i32) -> (i32, i32) {
    %c0_i32 = arith.constant 0 : i32
    %c0_i32_0 = arith.constant 0 : i32
    %c0_i32_1 = arith.constant 0 : i32
    return %c0_i32, %c0_i32_0 : i32, i32
  }
  func.func @transform_2(%arg0: i32) -> (i32, i32) {
    %c0_i32 = arith.constant 0 : i32
    %c0_i32_0 = arith.constant 0 : i32
    %c0_i32_1 = arith.constant 0 : i32
    return %c0_i32, %c0_i32_0 : i32, i32
  }
  func.func @transform_3(%arg0: i32) -> (i32, i32) {
    %c0_i32 = arith.constant 0 : i32
    %c0_i32_0 = arith.constant 0 : i32
    %c0_i32_1 = arith.constant 0 : i32
    return %c0_i32, %c0_i32_0 : i32, i32
  }
  func.func @transform_4(%arg0: i32) -> (i32, i32) {
    %c0_i32 = arith.constant 0 : i32
    %c0_i32_0 = arith.constant 0 : i32
    %c0_i32_1 = arith.constant 0 : i32
    return %c0_i32, %c0_i32_0 : i32, i32
  }
  func.func @transform_5(%arg0: i32) -> (i32, i32) {
    %c0_i32 = arith.constant 0 : i32
    %c0_i32_0 = arith.constant 0 : i32
    %c0_i32_1 = arith.constant 0 : i32
    return %c0_i32, %c0_i32_0 : i32, i32
  }
  func.func @transform_6(%arg0: i32) -> (i32, i32) {
    %c0_i32 = arith.constant 0 : i32
    %c0_i32_0 = arith.constant 0 : i32
    %c0_i32_1 = arith.constant 0 : i32
    return %c0_i32, %c0_i32_0 : i32, i32
  }
  func.func @transform_7(%arg0: i32) -> (i32, i32) {
    %c0_i32 = arith.constant 0 : i32
    %c0_i32_0 = arith.constant 0 : i32
    return %arg0, %c0_i32 : i32, i32
  }
}

module attributes {stable_mosaic.version = 11 : i64} {
  func.func @kernel(%arg0: i32, %arg1: memref<32x128xf32, #tpu.memory_space<vmem>>, %arg2: memref<384x128xf32, #tpu.memory_space<vmem>>, %arg3: memref<1x128xf32, #tpu.memory_space<vmem>>, %arg4: memref<1x128xf32, #tpu.memory_space<vmem>>, %arg5: memref<384x128xf32, #tpu.memory_space<vmem>>, %arg6: memref<1x128xf32, #tpu.memory_space<vmem>>, %arg7: memref<1x128xf32, #tpu.memory_space<vmem>>, %arg8: memref<32x128xf32, #tpu.memory_space<vmem>>) attributes {dimension_semantics = [#tpu.dimension_semantics<parallel>], iteration_bounds = array<i64: 1>, scalar_prefetch = 0 : i64, scratch_operands = 0 : i64, tpu.core_type = #tpu.core_type<tc>, window_params = [{transform_indices = @transform_0, window_bounds = array<i64: 32, 128>}, {pipeline_mode = #tpu.pipeline_mode<synchronous>, transform_indices = @transform_1, window_bounds = array<i64: 384, 128>}, {pipeline_mode = #tpu.pipeline_mode<synchronous>, transform_indices = @transform_2, window_bounds = array<i64: 1, 128>}, {pipeline_mode = #tpu.pipeline_mode<synchronous>, transform_indices = @transform_3, window_bounds = array<i64: 1, 128>}, {pipeline_mode = #tpu.pipeline_mode<synchronous>, transform_indices = @transform_4, window_bounds = array<i64: 384, 128>}, {pipeline_mode = #tpu.pipeline_mode<synchronous>, transform_indices = @transform_5, window_bounds = array<i64: 1, 128>}, {pipeline_mode = #tpu.pipeline_mode<synchronous>, transform_indices = @transform_6, window_bounds = array<i64: 1, 128>}, {transform_indices = @transform_7, window_bounds = array<i64: 32, 128>}]} {
    %c0 = arith.constant 0 : index
    %c0_0 = arith.constant 0 : index
    %0 = vector.load %arg1[%c0, %c0_0] : memref<32x128xf32, #tpu.memory_space<vmem>>, vector<32x128xf32>
    %1 = tpu.iota {dimensions = array<i32: 0>} : vector<32x128xi32>
    %c0_i32 = arith.constant 0 : i32
    %2 = vector.broadcast %c0_i32 : i32 to vector<32x128xi32>
    %3 = arith.cmpi eq, %1, %2 : vector<32x128xi32>
    %c15_i32 = arith.constant 15 : i32
    %4 = vector.broadcast %c15_i32 : i32 to vector<32x128xi32>
    %5 = arith.cmpi eq, %1, %4 : vector<32x128xi32>
    %c16_i32 = arith.constant 16 : i32
    %6 = vector.broadcast %c16_i32 : i32 to vector<32x128xi32>
    %7 = arith.cmpi eq, %1, %6 : vector<32x128xi32>
    %8 = arith.ori %3, %7 : vector<32x128xi1>
    %c31_i32 = arith.constant 31 : i32
    %9 = vector.broadcast %c31_i32 : i32 to vector<32x128xi32>
    %10 = arith.cmpi eq, %1, %9 : vector<32x128xi32>
    %11 = arith.ori %5, %10 : vector<32x128xi1>
    %c1_i32 = arith.constant 1 : i32
    %12 = tpu.dynamic_rotate %0 by %c1_i32 dim 0 : vector<32x128xf32>, i32 -> vector<32x128xf32>
    %cst = arith.constant 0.000000e+00 : f32
    %13 = vector.broadcast %cst : f32 to vector<32x128xf32>
    %14 = arith.select %8, %13, %12 : vector<32x128xi1>, vector<32x128xf32>
    %c31_i32_1 = arith.constant 31 : i32
    %15 = tpu.dynamic_rotate %0 by %c31_i32_1 dim 0 : vector<32x128xf32>, i32 -> vector<32x128xf32>
    %cst_2 = arith.constant 0.000000e+00 : f32
    %16 = vector.broadcast %cst_2 : f32 to vector<32x128xf32>
    %17 = arith.select %11, %16, %15 : vector<32x128xi1>, vector<32x128xf32>
    %18 = tpu.concatenate %14, %0, %17 in 1 : vector<32x128xf32>, vector<32x128xf32>, vector<32x128xf32> -> vector<32x384xf32>
    %c0_3 = arith.constant 0 : index
    %c0_4 = arith.constant 0 : index
    %19 = vector.load %arg2[%c0_3, %c0_4] : memref<384x128xf32, #tpu.memory_space<vmem>>, vector<384x128xf32>
    %cst_5 = arith.constant dense<0.000000e+00> : vector<32x128xf32>
    %20 = tpu.matmul %18, %19, %cst_5 {dimension_numbers = #tpu.dot_dimension_numbers<[1], [0], [0], [1], [0, 0, 1, 1], [], []>} : vector<32x384xf32>, vector<384x128xf32>, vector<32x128xf32> -> vector<32x128xf32>
    %c0_6 = arith.constant 0 : index
    %c0_7 = arith.constant 0 : index
    %21 = vector.load %arg3[%c0_6, %c0_7] : memref<1x128xf32, #tpu.memory_space<vmem>>, vector<1x128xf32>
    %22 = vector.broadcast %21 : vector<1x128xf32> to vector<32x128xf32>
    %23 = arith.mulf %20, %22 : vector<32x128xf32>
    %c0_8 = arith.constant 0 : index
    %c0_9 = arith.constant 0 : index
    %24 = vector.load %arg4[%c0_8, %c0_9] : memref<1x128xf32, #tpu.memory_space<vmem>>, vector<1x128xf32>
    %25 = vector.broadcast %24 : vector<1x128xf32> to vector<32x128xf32>
    %26 = arith.addf %23, %25 : vector<32x128xf32>
    %cst_10 = arith.constant 0.000000e+00 : f32
    %27 = vector.broadcast %cst_10 : f32 to vector<32x128xf32>
    %28 = arith.maximumf %26, %27 : vector<32x128xf32>
    %c1_i32_11 = arith.constant 1 : i32
    %29 = tpu.dynamic_rotate %28 by %c1_i32_11 dim 0 : vector<32x128xf32>, i32 -> vector<32x128xf32>
    %cst_12 = arith.constant 0.000000e+00 : f32
    %30 = vector.broadcast %cst_12 : f32 to vector<32x128xf32>
    %31 = arith.select %8, %30, %29 : vector<32x128xi1>, vector<32x128xf32>
    %c31_i32_13 = arith.constant 31 : i32
    %32 = tpu.dynamic_rotate %28 by %c31_i32_13 dim 0 : vector<32x128xf32>, i32 -> vector<32x128xf32>
    %cst_14 = arith.constant 0.000000e+00 : f32
    %33 = vector.broadcast %cst_14 : f32 to vector<32x128xf32>
    %34 = arith.select %11, %33, %32 : vector<32x128xi1>, vector<32x128xf32>
    %35 = tpu.concatenate %31, %28, %34 in 1 : vector<32x128xf32>, vector<32x128xf32>, vector<32x128xf32> -> vector<32x384xf32>
    %c0_15 = arith.constant 0 : index
    %c0_16 = arith.constant 0 : index
    %36 = vector.load %arg5[%c0_15, %c0_16] : memref<384x128xf32, #tpu.memory_space<vmem>>, vector<384x128xf32>
    %cst_17 = arith.constant dense<0.000000e+00> : vector<32x128xf32>
    %37 = tpu.matmul %35, %36, %cst_17 {dimension_numbers = #tpu.dot_dimension_numbers<[1], [0], [0], [1], [0, 0, 1, 1], [], []>} : vector<32x384xf32>, vector<384x128xf32>, vector<32x128xf32> -> vector<32x128xf32>
    %c0_18 = arith.constant 0 : index
    %c0_19 = arith.constant 0 : index
    %38 = vector.load %arg6[%c0_18, %c0_19] : memref<1x128xf32, #tpu.memory_space<vmem>>, vector<1x128xf32>
    %39 = vector.broadcast %38 : vector<1x128xf32> to vector<32x128xf32>
    %40 = arith.mulf %37, %39 : vector<32x128xf32>
    %c0_20 = arith.constant 0 : index
    %c0_21 = arith.constant 0 : index
    %41 = vector.load %arg7[%c0_20, %c0_21] : memref<1x128xf32, #tpu.memory_space<vmem>>, vector<1x128xf32>
    %42 = vector.broadcast %41 : vector<1x128xf32> to vector<32x128xf32>
    %43 = arith.addf %40, %42 : vector<32x128xf32>
    %44 = arith.addf %43, %0 : vector<32x128xf32>
    %cst_22 = arith.constant 0.000000e+00 : f32
    %45 = vector.broadcast %cst_22 : f32 to vector<32x128xf32>
    %46 = arith.maximumf %44, %45 : vector<32x128xf32>
    %c0_23 = arith.constant 0 : index
    %c0_24 = arith.constant 0 : index
    %47 = vector.load %arg8[%c0_23, %c0_24] : memref<32x128xf32, #tpu.memory_space<vmem>>, vector<32x128xf32>
    tpu.vector_store %arg8[%c0_23, %c0_24], %46 {strides = array<i32>} : memref<32x128xf32, #tpu.memory_space<vmem>>, vector<32x128xf32>,
    return
  }
  func.func @transform_0(%arg0: i32) -> (i32, i32) {
    %c0_i32 = arith.constant 0 : i32
    %c0_i32_0 = arith.constant 0 : i32
    return %arg0, %c0_i32 : i32, i32
  }
  func.func @transform_1(%arg0: i32) -> (i32, i32) {
    %c0_i32 = arith.constant 0 : i32
    %c0_i32_0 = arith.constant 0 : i32
    %c0_i32_1 = arith.constant 0 : i32
    return %c0_i32, %c0_i32_0 : i32, i32
  }
  func.func @transform_2(%arg0: i32) -> (i32, i32) {
    %c0_i32 = arith.constant 0 : i32
    %c0_i32_0 = arith.constant 0 : i32
    %c0_i32_1 = arith.constant 0 : i32
    return %c0_i32, %c0_i32_0 : i32, i32
  }
  func.func @transform_3(%arg0: i32) -> (i32, i32) {
    %c0_i32 = arith.constant 0 : i32
    %c0_i32_0 = arith.constant 0 : i32
    %c0_i32_1 = arith.constant 0 : i32
    return %c0_i32, %c0_i32_0 : i32, i32
  }
  func.func @transform_4(%arg0: i32) -> (i32, i32) {
    %c0_i32 = arith.constant 0 : i32
    %c0_i32_0 = arith.constant 0 : i32
    %c0_i32_1 = arith.constant 0 : i32
    return %c0_i32, %c0_i32_0 : i32, i32
  }
  func.func @transform_5(%arg0: i32) -> (i32, i32) {
    %c0_i32 = arith.constant 0 : i32
    %c0_i32_0 = arith.constant 0 : i32
    %c0_i32_1 = arith.constant 0 : i32
    return %c0_i32, %c0_i32_0 : i32, i32
  }
  func.func @transform_6(%arg0: i32) -> (i32, i32) {
    %c0_i32 = arith.constant 0 : i32
    %c0_i32_0 = arith.constant 0 : i32
    %c0_i32_1 = arith.constant 0 : i32
    return %c0_i32, %c0_i32_0 : i32, i32
  }
  func.func @transform_7(%arg0: i32) -> (i32, i32) {
    %c0_i32 = arith.constant 0 : i32
    %c0_i32_0 = arith.constant 0 : i32
    return %arg0, %c0_i32 : i32, i32
  }
}

</mosaic_0001>

<llo_original>
// kernel: tpu_custom_call.1
$region0: #{tpu_custom_call.1}
  #allocation0 [shape = 'u32[]', space=smem, size = 0x4, offset = 0x4, fixed_abs, tag = 'smem constant byte address 0x4 - core index']
  #allocation1 [shape = 'u32[144,128]{1,0:T(1,128)}', space=vmem, size = 0x12000, scoped, tag = 'internal scratch']
  %s0 = inlined_call_operand.hbm [shape: f32[32,128], index: 0, kind: input, shape index: {}]
  %s1 = inlined_call_operand.hbm [shape: f32[384,128], index: 1, kind: input, shape index: {}]
  %s2 = inlined_call_operand.vmem [shape: f32[1,128], index: 2, kind: input, shape index: {}]
  %s3 = inlined_call_operand.vmem [shape: f32[1,128], index: 3, kind: input, shape index: {}]
  %s4 = inlined_call_operand.hbm [shape: f32[384,128], index: 4, kind: input, shape index: {}]
  %s5 = inlined_call_operand.vmem [shape: f32[1,128], index: 5, kind: input, shape index: {}]
  %s6 = inlined_call_operand.vmem [shape: f32[1,128], index: 6, kind: input, shape index: {}]
  %s7 = inlined_call_operand.hbm [shape: f32[32,128], index: 7, kind: output, shape index: {}]
  %s8 = sld [smem:[#allocation0]]
  $region50: #{tpu_custom_call.1} parent=0
    _
  %s10 = ssub.s32 1, %s8
  %s11 = scalar_select 0, %s10, %s8
  $region1: #{tpu_custom_call.1} parent=0
    #allocation2 [shape = 'u8[16384]{0}', space=vmem, size = 0x4000, scoped, tag = 'input window, operand 0, single buffered']
    #allocation3 [shape = 's32[1]{0}', space=sflag, size = 0x4, scoped, tag = 'scoped memory for tpu_custom_call.1']
    #allocation4 [shape = 's32[1]{0}', space=sflag, size = 0x4, scoped, tag = 'scoped memory for tpu_custom_call.1']
    #allocation5 [shape = 'u8[196608]{0}', space=vmem, size = 0x30000, scoped, tag = 'input window, operand 1, single buffered']
    #allocation6 [shape = 's32[1]{0}', space=sflag, size = 0x4, scoped, tag = 'scoped memory for tpu_custom_call.1']
    #allocation7 [shape = 'u8[196608]{0}', space=vmem, size = 0x30000, scoped, tag = 'input window, operand 4, single buffered']
    #allocation8 [shape = 'u8[16384]{0}', space=vmem, size = 0x4000, scoped, tag = 'output window, operand 0, single buffered']
    %12 = vsyncpa [#allocation3], 0
    %13 = vsyncpa [#allocation6], 0
    %14 = vsyncpa [#allocation4], 0
    // Predicated region
    $region2: #{tpu_custom_call.1} parent=1 // pred_check
      _
    $region3: #{tpu_custom_call.1} parent=1 // pred_check_branch
      %16 = sbr.rel (0) target = $region5
    $region4: #{tpu_custom_call.1} parent=1 // pred_region
      %s18 = ssub.s32 512, 512
      %19 = vsyncadd [#allocation3], %s18
      %s20 = sshll.u32 [#allocation2], 4
      %s21 = int_to_ptr.vmem [resolvable:$true] %s20
      %26 = dma.hbm_to_vmem [thread:$0]  %s0, 512, %s21, [#allocation3], 128, 128, 8
    $region5: #{tpu_custom_call.1} parent=1 // pred_fallthru
      _
    // Predicated region
    $region6: #{tpu_custom_call.1} parent=1 // pred_check
      _
    $region7: #{tpu_custom_call.1} parent=1 // pred_check_branch
      %28 = sbr.rel (0) target = $region9
    $region8: #{tpu_custom_call.1} parent=1 // pred_region
      %s30 = ssub.s32 6144, 6144
      %31 = vsyncadd [#allocation6], %s30
      %s32 = sshll.u32 [#allocation5], 4
      %s33 = int_to_ptr.vmem [resolvable:$true] %s32
      %38 = dma.hbm_to_vmem [thread:$0]  %s1, 6144, %s33, [#allocation6], 128, 128, 8
    $region9: #{tpu_custom_call.1} parent=1 // pred_fallthru
      _
    // Predicated region
    $region10: #{tpu_custom_call.1} parent=1 // pred_check
      _
    $region11: #{tpu_custom_call.1} parent=1 // pred_check_branch
      %40 = sbr.rel (0) target = $region13
    $region12: #{tpu_custom_call.1} parent=1 // pred_region
      _
    $region13: #{tpu_custom_call.1} parent=1 // pred_fallthru
      _
    // Predicated region
    $region14: #{tpu_custom_call.1} parent=1 // pred_check
      _
    $region15: #{tpu_custom_call.1} parent=1 // pred_check_branch
      %42 = sbr.rel (0) target = $region17
    $region16: #{tpu_custom_call.1} parent=1 // pred_region
      _
    $region17: #{tpu_custom_call.1} parent=1 // pred_fallthru
      _
    // Predicated region
    $region18: #{tpu_custom_call.1} parent=1 // pred_check
      _
    $region19: #{tpu_custom_call.1} parent=1 // pred_check_branch
      %44 = sbr.rel (0) target = $region21
    $region20: #{tpu_custom_call.1} parent=1 // pred_region
      %s46 = ssub.s32 6144, 6144
      %47 = vsyncadd [#allocation6], %s46
      %s48 = sshll.u32 [#allocation7], 4
      %s49 = int_to_ptr.vmem [resolvable:$true] %s48
      %54 = dma.hbm_to_vmem [thread:$0]  %s4, 6144, %s49, [#allocation6], 128, 128, 8
    $region21: #{tpu_custom_call.1} parent=1 // pred_fallthru
      _
    // Predicated region
    $region22: #{tpu_custom_call.1} parent=1 // pred_check
      _
    $region23: #{tpu_custom_call.1} parent=1 // pred_check_branch
      %56 = sbr.rel (0) target = $region25
    $region24: #{tpu_custom_call.1} parent=1 // pred_region
      _
    $region25: #{tpu_custom_call.1} parent=1 // pred_fallthru
      _
    // Predicated region
    $region26: #{tpu_custom_call.1} parent=1 // pred_check
      _
    $region27: #{tpu_custom_call.1} parent=1 // pred_check_branch
      %58 = sbr.rel (0) target = $region29
    $region28: #{tpu_custom_call.1} parent=1 // pred_region
      _
    $region29: #{tpu_custom_call.1} parent=1 // pred_fallthru
      _
    // Predicated region
    $region30: #{tpu_custom_call.1} parent=1 // pred_check
      _
    $region31: #{tpu_custom_call.1} parent=1 // pred_check_branch
      %60 = sbr.rel (0) target = $region33
    $region32: #{tpu_custom_call.1} parent=1 // pred_region
      %61 = dma.done [#allocation3], 512
    $region33: #{tpu_custom_call.1} parent=1 // pred_fallthru
      _
    // Predicated region
    $region34: #{tpu_custom_call.1} parent=1 // pred_check
      _
    $region35: #{tpu_custom_call.1} parent=1 // pred_check_branch
      %63 = sbr.rel (0) target = $region37
    $region36: #{tpu_custom_call.1} parent=1 // pred_region
      %64 = dma.done [#allocation6], 6144
    $region37: #{tpu_custom_call.1} parent=1 // pred_fallthru
      _
    // Predicated region
    $region38: #{tpu_custom_call.1} parent=1 // pred_check
      _
    $region39: #{tpu_custom_call.1} parent=1 // pred_check_branch
      %66 = sbr.rel (0) target = $region41
    $region40: #{tpu_custom_call.1} parent=1 // pred_region
      %67 = dma.done [#allocation6], 6144
    $region41: #{tpu_custom_call.1} parent=1 // pred_fallthru
      _
    %v68 = vld [vmem:[#allocation2] sm:$0xff]
    %v69 = vld [vmem:[#allocation2 + $0x8] sm:$0xff]
    %v70 = vld [vmem:[#allocation2 + $0x10] sm:$0xff]
    %v71 = vld [vmem:[#allocation2 + $0x18] sm:$0xff]
    %v72 = vlaneseq
    %v73 = vshrl.u32 %v72, 7
    %v74 = vadd.s32 %v73, 8
    %v75 = vadd.s32 %v73, 16
    %v76 = vadd.s32 %v73, 24
    %vm77 = vcmp.eq.s32.totalorder %v73, 0
    %vm78 = vcmp.eq.s32.totalorder %v74, 0
    %vm79 = vcmp.eq.s32.totalorder %v75, 0
    %vm80 = vcmp.eq.s32.totalorder %v76, 0
    %vm81 = vcmp.eq.s32.totalorder %v73, 15
    %vm82 = vcmp.eq.s32.totalorder %v74, 15
    %vm83 = vcmp.eq.s32.totalorder %v75, 15
    %vm84 = vcmp.eq.s32.totalorder %v76, 15
    %vm85 = vcmp.eq.s32.totalorder %v73, 16
    %vm86 = vcmp.eq.s32.totalorder %v74, 16
    %vm87 = vcmp.eq.s32.totalorder %v75, 16
    %vm88 = vcmp.eq.s32.totalorder %v76, 16
    %vm89 = vmor %vm77, %vm85
    %vm90 = vmor %vm78, %vm86
    %vm91 = vmor %vm79, %vm87
    %vm92 = vmor %vm80, %vm88
    %vm93 = vcmp.eq.s32.totalorder %v73, 31
    %vm94 = vcmp.eq.s32.totalorder %v74, 31
    %vm95 = vcmp.eq.s32.totalorder %v75, 31
    %vm96 = vcmp.eq.s32.totalorder %v76, 31
    %vm97 = vmor %vm81, %vm93
    %vm98 = vmor %vm82, %vm94
    %vm99 = vmor %vm83, %vm95
    %vm100 = vmor %vm84, %vm96
    %v101 = vrot.slane %v68, 7
    %v102 = vrot.slane %v69, 7
    %v103 = vrot.slane %v70, 7
    %v104 = vrot.slane %v71, 7
    %vm105 = vcmp.lt.s32.totalorder %v73, 1
    %v106 = vsel %vm105, %v103, %v104
    %v107 = vsel %vm105, %v102, %v103
    %v108 = vsel %vm105, %v101, %v102
    %v109 = vsel %vm105, %v104, %v101
    %v110 = vsel %vm89, 0.0, %v109
    %v111 = vsel %vm90, 0.0, %v108
    %v112 = vsel %vm91, 0.0, %v107
    %v113 = vsel %vm92, 0.0, %v106
    %v114 = vrot.slane %v68, 1
    %v115 = vrot.slane %v69, 1
    %v116 = vrot.slane %v70, 1
    %v117 = vrot.slane %v71, 1
    %vm118 = vcmp.lt.s32.totalorder %v73, 7
    %v119 = vsel %vm118, %v116, %v117
    %v120 = vsel %vm118, %v115, %v116
    %v121 = vsel %vm118, %v114, %v115
    %v122 = vsel %vm118, %v117, %v114
    %v123 = vsel %vm97, 0.0, %v121
    %v124 = vsel %vm98, 0.0, %v120
    %v125 = vsel %vm99, 0.0, %v119
    %v126 = vsel %vm100, 0.0, %v122
    %v127 = vld [vmem:[#allocation5] sm:$0xff]
    %v128 = vld [vmem:[#allocation5 + $0x8] sm:$0xff]
    %v129 = vld [vmem:[#allocation5 + $0x10] sm:$0xff]
    %v130 = vld [vmem:[#allocation5 + $0x18] sm:$0xff]
    %v131 = vld [vmem:[#allocation5 + $0x20] sm:$0xff]
    %v132 = vld [vmem:[#allocation5 + $0x28] sm:$0xff]
    %v133 = vld [vmem:[#allocation5 + $0x30] sm:$0xff]
    %v134 = vld [vmem:[#allocation5 + $0x38] sm:$0xff]
    %v135 = vld [vmem:[#allocation5 + $0x40] sm:$0xff]
    %v136 = vld [vmem:[#allocation5 + $0x48] sm:$0xff]
    %v137 = vld [vmem:[#allocation5 + $0x50] sm:$0xff]
    %v138 = vld [vmem:[#allocation5 + $0x58] sm:$0xff]
    %v139 = vld [vmem:[#allocation5 + $0x60] sm:$0xff]
    %v140 = vld [vmem:[#allocation5 + $0x68] sm:$0xff]
    %v141 = vld [vmem:[#allocation5 + $0x70] sm:$0xff]
    %v142 = vld [vmem:[#allocation5 + $0x78] sm:$0xff]
    %v143 = vld [vmem:[#allocation5 + $0x80] sm:$0xff]
    %v144 = vld [vmem:[#allocation5 + $0x88] sm:$0xff]
    %v145 = vld [vmem:[#allocation5 + $0x90] sm:$0xff]
    %v146 = vld [vmem:[#allocation5 + $0x98] sm:$0xff]
    %v147 = vld [vmem:[#allocation5 + $0xa0] sm:$0xff]
    %v148 = vld [vmem:[#allocation5 + $0xa8] sm:$0xff]
    %v149 = vld [vmem:[#allocation5 + $0xb0] sm:$0xff]
    %v150 = vld [vmem:[#allocation5 + $0xb8] sm:$0xff]
    %v151 = vld [vmem:[#allocation5 + $0xc0] sm:$0xff]
    %v152 = vld [vmem:[#allocation5 + $0xc8] sm:$0xff]
    %v153 = vld [vmem:[#allocation5 + $0xd0] sm:$0xff]
    %v154 = vld [vmem:[#allocation5 + $0xd8] sm:$0xff]
    %v155 = vld [vmem:[#allocation5 + $0xe0] sm:$0xff]
    %v156 = vld [vmem:[#allocation5 + $0xe8] sm:$0xff]
    %v157 = vld [vmem:[#allocation5 + $0xf0] sm:$0xff]
    %v158 = vld [vmem:[#allocation5 + $0xf8] sm:$0xff]
    %v159 = vld [vmem:[#allocation5 + $0x100] sm:$0xff]
    %v160 = vld [vmem:[#allocation5 + $0x108] sm:$0xff]
    %v161 = vld [vmem:[#allocation5 + $0x110] sm:$0xff]
    %v162 = vld [vmem:[#allocation5 + $0x118] sm:$0xff]
    %v163 = vld [vmem:[#allocation5 + $0x120] sm:$0xff]
    %v164 = vld [vmem:[#allocation5 + $0x128] sm:$0xff]
    %v165 = vld [vmem:[#allocation5 + $0x130] sm:$0xff]
    %v166 = vld [vmem:[#allocation5 + $0x138] sm:$0xff]
    %v167 = vld [vmem:[#allocation5 + $0x140] sm:$0xff]
    %v168 = vld [vmem:[#allocation5 + $0x148] sm:$0xff]
    %v169 = vld [vmem:[#allocation5 + $0x150] sm:$0xff]
    %v170 = vld [vmem:[#allocation5 + $0x158] sm:$0xff]
    %v171 = vld [vmem:[#allocation5 + $0x160] sm:$0xff]
    %v172 = vld [vmem:[#allocation5 + $0x168] sm:$0xff]
    %v173 = vld [vmem:[#allocation5 + $0x170] sm:$0xff]
    %v174 = vld [vmem:[#allocation5 + $0x178] sm:$0xff]
    %175 = vmatprep.subr.mxu0 0.0
    %176 = vmatpush1.msra.mxu0 %v127
    %177 = vmatprep.subr.mxu0 0.0
    %178 = vmatpush1.msra.mxu0 %v128
    %179 = vmatprep.subr.mxu0 0.0
    %180 = vmatpush1.msra.mxu0 %v129
    %181 = vmatprep.subr.mxu0 0.0
    %182 = vmatpush1.msra.mxu0 %v130
    %183 = vmatprep.subr.mxu0 0.0
    %184 = vmatpush1.msra.mxu0 %v131
    %185 = vmatprep.subr.mxu0 0.0
    %186 = vmatpush1.msra.mxu0 %v132
    %187 = vmatprep.subr.mxu0 0.0
    %188 = vmatpush1.msra.mxu0 %v133
    %189 = vmatprep.subr.mxu0 0.0
    %190 = vmatpush1.msra.mxu0 %v134
    %191 = vmatprep.subr.mxu0 0.0
    %192 = vmatpush1.msra.mxu0 %v135
    %193 = vmatprep.subr.mxu0 0.0
    %194 = vmatpush1.msra.mxu0 %v136
    %195 = vmatprep.subr.mxu0 0.0
    %196 = vmatpush1.msra.mxu0 %v137
    %197 = vmatprep.subr.mxu0 0.0
    %198 = vmatpush1.msra.mxu0 %v138
    %199 = vmatprep.subr.mxu0 0.0
    %200 = vmatpush1.msra.mxu0 %v139
    %201 = vmatprep.subr.mxu0 0.0
    %202 = vmatpush1.msra.mxu0 %v140
    %203 = vmatprep.subr.mxu0 0.0
    %204 = vmatpush1.msra.mxu0 %v141
    %205 = vmatprep.subr.mxu0 0.0
    %206 = vmatpush1.msra.mxu0 %v142
    %207 = vmatprep.subr.mxu0 0.0
    %208 = vmatpush1.msra.mxu0 %v143
    %209 = vmatprep.subr.mxu0 0.0
    %210 = vmatpush1.msra.mxu0 %v144
    %211 = vmatprep.subr.mxu0 0.0
    %212 = vmatpush1.msra.mxu0 %v145
    %213 = vmatprep.subr.mxu0 0.0
    %214 = vmatpush1.msra.mxu0 %v146
    %215 = vmatprep.subr.mxu0 0.0
    %216 = vmatpush1.msra.mxu0 %v147
    %217 = vmatprep.subr.mxu0 0.0
    %218 = vmatpush1.msra.mxu0 %v148
    %219 = vmatprep.subr.mxu0 0.0
    %220 = vmatpush1.msra.mxu0 %v149
    %221 = vmatprep.subr.mxu0 0.0
    %222 = vmatpush1.msra.mxu0 %v150
    %223 = vmatprep.subr.mxu0 0.0
    %224 = vmatpush1.msra.mxu0 %v151
    %225 = vmatprep.subr.mxu0 0.0
    %226 = vmatpush1.msra.mxu0 %v152
    %227 = vmatprep.subr.mxu0 0.0
    %228 = vmatpush1.msra.mxu0 %v153
    %229 = vmatprep.subr.mxu0 0.0
    %230 = vmatpush1.msra.mxu0 %v154
    %231 = vmatprep.subr.mxu0 0.0
    %232 = vmatpush1.msra.mxu0 %v155
    %233 = vmatprep.subr.mxu0 0.0
    %234 = vmatpush1.msra.mxu0 %v156
    %235 = vmatprep.subr.mxu0 0.0
    %236 = vmatpush1.msra.mxu0 %v157
    %237 = vmatprep.subr.mxu0 0.0
    %238 = vmatpush1.msra.mxu0 %v158
    %239 = vmatprep.mubr.f32.mxu0 %v68
    %240 = vmatmul.mubr.f32.gmra.mrb[0].mxu0 %v110
    %v241 = vpop.f32.mrb[0].mxu0
    %v242 = vadd.f32 0.0, %v241
    %v243 = vpop.f32.mrb[0].mxu0
    %244 = vmatprep.mubr.f32.mxu0 %v69
    %245 = vmatmul.mubr.f32.gmra.mrb[0].mxu0 %v111
    %v246 = vpop.f32.mrb[0].mxu0
    %v247 = vadd.f32 0.0, %v246
    %v248 = vpop.f32.mrb[0].mxu0
    %249 = vmatprep.mubr.f32.mxu0 %v70
    %250 = vmatmul.mubr.f32.gmra.mrb[0].mxu0 %v112
    %v251 = vpop.f32.mrb[0].mxu0
    %v252 = vadd.f32 0.0, %v251
    %v253 = vpop.f32.mrb[0].mxu0
    %254 = vmatprep.mubr.f32.mxu0 %v71
    %255 = vmatmul.mubr.f32.gmra.mrb[0].mxu0 %v113
    %v256 = vpop.f32.mrb[0].mxu0
    %v257 = vadd.f32 0.0, %v256
    %v258 = vpop.f32.mrb[0].mxu0
    %259 = vdwg.mxu0
    %260 = vmatprep.subr.mxu0 0.0
    %261 = vmatpush1.msra.mxu0 %v159
    %262 = vmatprep.subr.mxu0 0.0
    %263 = vmatpush1.msra.mxu0 %v160
    %264 = vmatprep.subr.mxu0 0.0
    %265 = vmatpush1.msra.mxu0 %v161
    %266 = vmatprep.subr.mxu0 0.0
    %267 = vmatpush1.msra.mxu0 %v162
    %268 = vmatprep.subr.mxu0 0.0
    %269 = vmatpush1.msra.mxu0 %v163
    %270 = vmatprep.subr.mxu0 0.0
    %271 = vmatpush1.msra.mxu0 %v164
    %272 = vmatprep.subr.mxu0 0.0
    %273 = vmatpush1.msra.mxu0 %v165
    %274 = vmatprep.subr.mxu0 0.0
    %275 = vmatpush1.msra.mxu0 %v166
    %276 = vmatprep.subr.mxu0 0.0
    %277 = vmatpush1.msra.mxu0 %v167
    %278 = vmatprep.subr.mxu0 0.0
    %279 = vmatpush1.msra.mxu0 %v168
    %280 = vmatprep.subr.mxu0 0.0
    %281 = vmatpush1.msra.mxu0 %v169
    %282 = vmatprep.subr.mxu0 0.0
    %283 = vmatpush1.msra.mxu0 %v170
    %284 = vmatprep.subr.mxu0 0.0
    %285 = vmatpush1.msra.mxu0 %v171
    %286 = vmatprep.subr.mxu0 0.0
    %287 = vmatpush1.msra.mxu0 %v172
    %288 = vmatprep.subr.mxu0 0.0
    %289 = vmatpush1.msra.mxu0 %v173
    %290 = vmatprep.subr.mxu0 0.0
    %291 = vmatpush1.msra.mxu0 %v174
    %292 = vmatprep.subr.mxu0 0.0
    %293 = vmatpush1.msra.mxu0 0.0
    %294 = vmatprep.subr.mxu0 0.0
    %295 = vmatpush1.msra.mxu0 0.0
    %296 = vmatprep.subr.mxu0 0.0
    %297 = vmatpush1.msra.mxu0 0.0
    %298 = vmatprep.subr.mxu0 0.0
    %299 = vmatpush1.msra.mxu0 0.0
    %300 = vmatprep.subr.mxu0 0.0
    %301 = vmatpush1.msra.mxu0 0.0
    %302 = vmatprep.subr.mxu0 0.0
    %303 = vmatpush1.msra.mxu0 0.0
    %304 = vmatprep.subr.mxu0 0.0
    %305 = vmatpush1.msra.mxu0 0.0
    %306 = vmatprep.subr.mxu0 0.0
    %307 = vmatpush1.msra.mxu0 0.0
    %308 = vmatprep.subr.mxu0 0.0
    %309 = vmatpush1.msra.mxu0 0.0
    %310 = vmatprep.subr.mxu0 0.0
    %311 = vmatpush1.msra.mxu0 0.0
    %312 = vmatprep.subr.mxu0 0.0
    %313 = vmatpush1.msra.mxu0 0.0
    %314 = vmatprep.subr.mxu0 0.0
    %315 = vmatpush1.msra.mxu0 0.0
    %316 = vmatprep.subr.mxu0 0.0
    %317 = vmatpush1.msra.mxu0 0.0
    %318 = vmatprep.subr.mxu0 0.0
    %319 = vmatpush1.msra.mxu0 0.0
    %320 = vmatprep.subr.mxu0 0.0
    %321 = vmatpush1.msra.mxu0 0.0
    %322 = vmatprep.subr.mxu0 0.0
    %323 = vmatpush1.msra.mxu0 0.0
    %324 = vmatprep.mubr.f32.mxu0 0.0
    %325 = vmatmul.mubr.f32.gmra.mrb[0].mxu0 %v123
    %v326 = vpop.f32.mrb[0].mxu0
    %v327 = vadd.f32 %v242, %v326
    %v328 = vpop.f32.mrb[0].mxu0
    %329 = vmatprep.mubr.f32.mxu0 0.0
    %330 = vmatmul.mubr.f32.gmra.mrb[0].mxu0 %v124
    %v331 = vpop.f32.mrb[0].mxu0
    %v332 = vadd.f32 %v247, %v331
    %v333 = vpop.f32.mrb[0].mxu0
    %334 = vmatprep.mubr.f32.mxu0 0.0
    %335 = vmatmul.mubr.f32.gmra.mrb[0].mxu0 %v125
    %v336 = vpop.f32.mrb[0].mxu0
    %v337 = vadd.f32 %v252, %v336
    %v338 = vpop.f32.mrb[0].mxu0
    %339 = vmatprep.mubr.f32.mxu0 0.0
    %340 = vmatmul.mubr.f32.gmra.mrb[0].mxu0 %v126
    %v341 = vpop.f32.mrb[0].mxu0
    %v342 = vadd.f32 %v257, %v341
    %v343 = vpop.f32.mrb[0].mxu0
    %344 = vdwg.mxu0
    %v345 = vld [vmem:[%s2] sm:$0x1]
    %v347 = vlaneseq
    %v348 = vshrl.u32 %v347, 7
    %v349 = vsub.s32 0, %v348
    %v350 = vrot.slane %v345, %v349
    %v352 = vmul.f32 %v327, %v350
    %v353 = vmul.f32 %v332, %v350
    %v354 = vmul.f32 %v337, %v350
    %v355 = vmul.f32 %v342, %v350
    %v356 = vld [vmem:[%s3] sm:$0x1]
    %v358 = vlaneseq
    %v359 = vshrl.u32 %v358, 7
    %v360 = vsub.s32 0, %v359
    %v361 = vrot.slane %v356, %v360
    %v363 = vadd.f32 %v352, %v361
    %v364 = vadd.f32 %v353, %v361
    %v365 = vadd.f32 %v354, %v361
    %v366 = vadd.f32 %v355, %v361
    %v367 = vmax.f32 %v363, 0.0
    %v368 = vmax.f32 %v364, 0.0
    %v369 = vmax.f32 %v365, 0.0
    %v370 = vmax.f32 %v366, 0.0
    %v371 = vrot.slane %v367, 7
    %v372 = vrot.slane %v368, 7
    %v373 = vrot.slane %v369, 7
    %v374 = vrot.slane %v370, 7
    %v375 = vsel %vm105, %v373, %v374
    %v376 = vsel %vm105, %v372, %v373
    %v377 = vsel %vm105, %v371, %v372
    %v378 = vsel %vm105, %v374, %v371
    %v379 = vsel %vm89, 0.0, %v378
    %v380 = vsel %vm90, 0.0, %v377
    %v381 = vsel %vm91, 0.0, %v376
    %v382 = vsel %vm92, 0.0, %v375
    %v383 = vrot.slane %v367, 1
    %v384 = vrot.slane %v368, 1
    %v385 = vrot.slane %v369, 1
    %v386 = vrot.slane %v370, 1
    %v387 = vsel %vm118, %v385, %v386
    %v388 = vsel %vm118, %v384, %v385
    %v389 = vsel %vm118, %v383, %v384
    %v390 = vsel %vm118, %v386, %v383
    %v391 = vsel %vm97, 0.0, %v389
    %v392 = vsel %vm98, 0.0, %v388
    %v393 = vsel %vm99, 0.0, %v387
    %v394 = vsel %vm100, 0.0, %v390
    %v395 = vld [vmem:[#allocation7] sm:$0xff]
    %v396 = vld [vmem:[#allocation7 + $0x8] sm:$0xff]
    %v397 = vld [vmem:[#allocation7 + $0x10] sm:$0xff]
    %v398 = vld [vmem:[#allocation7 + $0x18] sm:$0xff]
    %v399 = vld [vmem:[#allocation7 + $0x20] sm:$0xff]
    %v400 = vld [vmem:[#allocation7 + $0x28] sm:$0xff]
    %v401 = vld [vmem:[#allocation7 + $0x30] sm:$0xff]
    %v402 = vld [vmem:[#allocation7 + $0x38] sm:$0xff]
    %v403 = vld [vmem:[#allocation7 + $0x40] sm:$0xff]
    %v404 = vld [vmem:[#allocation7 + $0x48] sm:$0xff]
    %v405 = vld [vmem:[#allocation7 + $0x50] sm:$0xff]
    %v406 = vld [vmem:[#allocation7 + $0x58] sm:$0xff]
    %v407 = vld [vmem:[#allocation7 + $0x60] sm:$0xff]
    %v408 = vld [vmem:[#allocation7 + $0x68] sm:$0xff]
    %v409 = vld [vmem:[#allocation7 + $0x70] sm:$0xff]
    %v410 = vld [vmem:[#allocation7 + $0x78] sm:$0xff]
    %v411 = vld [vmem:[#allocation7 + $0x80] sm:$0xff]
    %v412 = vld [vmem:[#allocation7 + $0x88] sm:$0xff]
    %v413 = vld [vmem:[#allocation7 + $0x90] sm:$0xff]
    %v414 = vld [vmem:[#allocation7 + $0x98] sm:$0xff]
    %v415 = vld [vmem:[#allocation7 + $0xa0] sm:$0xff]
    %v416 = vld [vmem:[#allocation7 + $0xa8] sm:$0xff]
    %v417 = vld [vmem:[#allocation7 + $0xb0] sm:$0xff]
    %v418 = vld [vmem:[#allocation7 + $0xb8] sm:$0xff]
    %v419 = vld [vmem:[#allocation7 + $0xc0] sm:$0xff]
    %v420 = vld [vmem:[#allocation7 + $0xc8] sm:$0xff]
    %v421 = vld [vmem:[#allocation7 + $0xd0] sm:$0xff]
    %v422 = vld [vmem:[#allocation7 + $0xd8] sm:$0xff]
    %v423 = vld [vmem:[#allocation7 + $0xe0] sm:$0xff]
    %v424 = vld [vmem:[#allocation7 + $0xe8] sm:$0xff]
    %v425 = vld [vmem:[#allocation7 + $0xf0] sm:$0xff]
    %v426 = vld [vmem:[#allocation7 + $0xf8] sm:$0xff]
    %v427 = vld [vmem:[#allocation7 + $0x100] sm:$0xff]
    %v428 = vld [vmem:[#allocation7 + $0x108] sm:$0xff]
    %v429 = vld [vmem:[#allocation7 + $0x110] sm:$0xff]
    %v430 = vld [vmem:[#allocation7 + $0x118] sm:$0xff]
    %v431 = vld [vmem:[#allocation7 + $0x120] sm:$0xff]
    %v432 = vld [vmem:[#allocation7 + $0x128] sm:$0xff]
    %v433 = vld [vmem:[#allocation7 + $0x130] sm:$0xff]
    %v434 = vld [vmem:[#allocation7 + $0x138] sm:$0xff]
    %v435 = vld [vmem:[#allocation7 + $0x140] sm:$0xff]
    %v436 = vld [vmem:[#allocation7 + $0x148] sm:$0xff]
    %v437 = vld [vmem:[#allocation7 + $0x150] sm:$0xff]
    %v438 = vld [vmem:[#allocation7 + $0x158] sm:$0xff]
    %v439 = vld [vmem:[#allocation7 + $0x160] sm:$0xff]
    %v440 = vld [vmem:[#allocation7 + $0x168] sm:$0xff]
    %v441 = vld [vmem:[#allocation7 + $0x170] sm:$0xff]
    %v442 = vld [vmem:[#allocation7 + $0x178] sm:$0xff]
    %443 = vmatprep.subr.mxu0 0.0
    %444 = vmatpush1.msra.mxu0 %v395
    %445 = vmatprep.subr.mxu0 0.0
    %446 = vmatpush1.msra.mxu0 %v396
    %447 = vmatprep.subr.mxu0 0.0
    %448 = vmatpush1.msra.mxu0 %v397
    %449 = vmatprep.subr.mxu0 0.0
    %450 = vmatpush1.msra.mxu0 %v398
    %451 = vmatprep.subr.mxu0 0.0
    %452 = vmatpush1.msra.mxu0 %v399
    %453 = vmatprep.subr.mxu0 0.0
    %454 = vmatpush1.msra.mxu0 %v400
    %455 = vmatprep.subr.mxu0 0.0
    %456 = vmatpush1.msra.mxu0 %v401
    %457 = vmatprep.subr.mxu0 0.0
    %458 = vmatpush1.msra.mxu0 %v402
    %459 = vmatprep.subr.mxu0 0.0
    %460 = vmatpush1.msra.mxu0 %v403
    %461 = vmatprep.subr.mxu0 0.0
    %462 = vmatpush1.msra.mxu0 %v404
    %463 = vmatprep.subr.mxu0 0.0
    %464 = vmatpush1.msra.mxu0 %v405
    %465 = vmatprep.subr.mxu0 0.0
    %466 = vmatpush1.msra.mxu0 %v406
    %467 = vmatprep.subr.mxu0 0.0
    %468 = vmatpush1.msra.mxu0 %v407
    %469 = vmatprep.subr.mxu0 0.0
    %470 = vmatpush1.msra.mxu0 %v408
    %471 = vmatprep.subr.mxu0 0.0
    %472 = vmatpush1.msra.mxu0 %v409
    %473 = vmatprep.subr.mxu0 0.0
    %474 = vmatpush1.msra.mxu0 %v410
    %475 = vmatprep.subr.mxu0 0.0
    %476 = vmatpush1.msra.mxu0 %v411
    %477 = vmatprep.subr.mxu0 0.0
    %478 = vmatpush1.msra.mxu0 %v412
    %479 = vmatprep.subr.mxu0 0.0
    %480 = vmatpush1.msra.mxu0 %v413
    %481 = vmatprep.subr.mxu0 0.0
    %482 = vmatpush1.msra.mxu0 %v414
    %483 = vmatprep.subr.mxu0 0.0
    %484 = vmatpush1.msra.mxu0 %v415
    %485 = vmatprep.subr.mxu0 0.0
    %486 = vmatpush1.msra.mxu0 %v416
    %487 = vmatprep.subr.mxu0 0.0
    %488 = vmatpush1.msra.mxu0 %v417
    %489 = vmatprep.subr.mxu0 0.0
    %490 = vmatpush1.msra.mxu0 %v418
    %491 = vmatprep.subr.mxu0 0.0
    %492 = vmatpush1.msra.mxu0 %v419
    %493 = vmatprep.subr.mxu0 0.0
    %494 = vmatpush1.msra.mxu0 %v420
    %495 = vmatprep.subr.mxu0 0.0
    %496 = vmatpush1.msra.mxu0 %v421
    %497 = vmatprep.subr.mxu0 0.0
    %498 = vmatpush1.msra.mxu0 %v422
    %499 = vmatprep.subr.mxu0 0.0
    %500 = vmatpush1.msra.mxu0 %v423
    %501 = vmatprep.subr.mxu0 0.0
    %502 = vmatpush1.msra.mxu0 %v424
    %503 = vmatprep.subr.mxu0 0.0
    %504 = vmatpush1.msra.mxu0 %v425
    %505 = vmatprep.subr.mxu0 0.0
    %506 = vmatpush1.msra.mxu0 %v426
    %507 = vmatprep.mubr.f32.mxu0 %v367
    %508 = vmatmul.mubr.f32.gmra.mrb[0].mxu0 %v379
    %v509 = vpop.f32.mrb[0].mxu0
    %v510 = vadd.f32 0.0, %v509
    %v511 = vpop.f32.mrb[0].mxu0
    %512 = vmatprep.mubr.f32.mxu0 %v368
    %513 = vmatmul.mubr.f32.gmra.mrb[0].mxu0 %v380
    %v514 = vpop.f32.mrb[0].mxu0
    %v515 = vadd.f32 0.0, %v514
    %v516 = vpop.f32.mrb[0].mxu0
    %517 = vmatprep.mubr.f32.mxu0 %v369
    %518 = vmatmul.mubr.f32.gmra.mrb[0].mxu0 %v381
    %v519 = vpop.f32.mrb[0].mxu0
    %v520 = vadd.f32 0.0, %v519
    %v521 = vpop.f32.mrb[0].mxu0
    %522 = vmatprep.mubr.f32.mxu0 %v370
    %523 = vmatmul.mubr.f32.gmra.mrb[0].mxu0 %v382
    %v524 = vpop.f32.mrb[0].mxu0
    %v525 = vadd.f32 0.0, %v524
    %v526 = vpop.f32.mrb[0].mxu0
    %527 = vdwg.mxu0
    %528 = vmatprep.subr.mxu0 0.0
    %529 = vmatpush1.msra.mxu0 %v427
    %530 = vmatprep.subr.mxu0 0.0
    %531 = vmatpush1.msra.mxu0 %v428
    %532 = vmatprep.subr.mxu0 0.0
    %533 = vmatpush1.msra.mxu0 %v429
    %534 = vmatprep.subr.mxu0 0.0
    %535 = vmatpush1.msra.mxu0 %v430
    %536 = vmatprep.subr.mxu0 0.0
    %537 = vmatpush1.msra.mxu0 %v431
    %538 = vmatprep.subr.mxu0 0.0
    %539 = vmatpush1.msra.mxu0 %v432
    %540 = vmatprep.subr.mxu0 0.0
    %541 = vmatpush1.msra.mxu0 %v433
    %542 = vmatprep.subr.mxu0 0.0
    %543 = vmatpush1.msra.mxu0 %v434
    %544 = vmatprep.subr.mxu0 0.0
    %545 = vmatpush1.msra.mxu0 %v435
    %546 = vmatprep.subr.mxu0 0.0
    %547 = vmatpush1.msra.mxu0 %v436
    %548 = vmatprep.subr.mxu0 0.0
    %549 = vmatpush1.msra.mxu0 %v437
    %550 = vmatprep.subr.mxu0 0.0
    %551 = vmatpush1.msra.mxu0 %v438
    %552 = vmatprep.subr.mxu0 0.0
    %553 = vmatpush1.msra.mxu0 %v439
    %554 = vmatprep.subr.mxu0 0.0
    %555 = vmatpush1.msra.mxu0 %v440
    %556 = vmatprep.subr.mxu0 0.0
    %557 = vmatpush1.msra.mxu0 %v441
    %558 = vmatprep.subr.mxu0 0.0
    %559 = vmatpush1.msra.mxu0 %v442
    %560 = vmatprep.subr.mxu0 0.0
    %561 = vmatpush1.msra.mxu0 0.0
    %562 = vmatprep.subr.mxu0 0.0
    %563 = vmatpush1.msra.mxu0 0.0
    %564 = vmatprep.subr.mxu0 0.0
    %565 = vmatpush1.msra.mxu0 0.0
    %566 = vmatprep.subr.mxu0 0.0
    %567 = vmatpush1.msra.mxu0 0.0
    %568 = vmatprep.subr.mxu0 0.0
    %569 = vmatpush1.msra.mxu0 0.0
    %570 = vmatprep.subr.mxu0 0.0
    %571 = vmatpush1.msra.mxu0 0.0
    %572 = vmatprep.subr.mxu0 0.0
    %573 = vmatpush1.msra.mxu0 0.0
    %574 = vmatprep.subr.mxu0 0.0
    %575 = vmatpush1.msra.mxu0 0.0
    %576 = vmatprep.subr.mxu0 0.0
    %577 = vmatpush1.msra.mxu0 0.0
    %578 = vmatprep.subr.mxu0 0.0
    %579 = vmatpush1.msra.mxu0 0.0
    %580 = vmatprep.subr.mxu0 0.0
    %581 = vmatpush1.msra.mxu0 0.0
    %582 = vmatprep.subr.mxu0 0.0
    %583 = vmatpush1.msra.mxu0 0.0
    %584 = vmatprep.subr.mxu0 0.0
    %585 = vmatpush1.msra.mxu0 0.0
    %586 = vmatprep.subr.mxu0 0.0
    %587 = vmatpush1.msra.mxu0 0.0
    %588 = vmatprep.subr.mxu0 0.0
    %589 = vmatpush1.msra.mxu0 0.0
    %590 = vmatprep.subr.mxu0 0.0
    %591 = vmatpush1.msra.mxu0 0.0
    %592 = vmatprep.mubr.f32.mxu0 0.0
    %593 = vmatmul.mubr.f32.gmra.mrb[0].mxu0 %v391
    %v594 = vpop.f32.mrb[0].mxu0
    %v595 = vadd.f32 %v510, %v594
    %v596 = vpop.f32.mrb[0].mxu0
    %597 = vmatprep.mubr.f32.mxu0 0.0
    %598 = vmatmul.mubr.f32.gmra.mrb[0].mxu0 %v392
    %v599 = vpop.f32.mrb[0].mxu0
    %v600 = vadd.f32 %v515, %v599
    %v601 = vpop.f32.mrb[0].mxu0
    %602 = vmatprep.mubr.f32.mxu0 0.0
    %603 = vmatmul.mubr.f32.gmra.mrb[0].mxu0 %v393
    %v604 = vpop.f32.mrb[0].mxu0
    %v605 = vadd.f32 %v520, %v604
    %v606 = vpop.f32.mrb[0].mxu0
    %607 = vmatprep.mubr.f32.mxu0 0.0
    %608 = vmatmul.mubr.f32.gmra.mrb[0].mxu0 %v394
    %v609 = vpop.f32.mrb[0].mxu0
    %v610 = vadd.f32 %v525, %v609
    %v611 = vpop.f32.mrb[0].mxu0
    %612 = vdwg.mxu0
    %v613 = vld [vmem:[%s5] sm:$0x1]
    %v615 = vlaneseq
    %v616 = vshrl.u32 %v615, 7
    %v617 = vsub.s32 0, %v616
    %v618 = vrot.slane %v613, %v617
    %v620 = vmul.f32 %v595, %v618
    %v621 = vmul.f32 %v600, %v618
    %v622 = vmul.f32 %v605, %v618
    %v623 = vmul.f32 %v610, %v618
    %v624 = vld [vmem:[%s6] sm:$0x1]
    %v626 = vlaneseq
    %v627 = vshrl.u32 %v626, 7
    %v628 = vsub.s32 0, %v627
    %v629 = vrot.slane %v624, %v628
    %v631 = vadd.f32 %v620, %v629
    %v632 = vadd.f32 %v621, %v629
    %v633 = vadd.f32 %v622, %v629
    %v634 = vadd.f32 %v623, %v629
    %v635 = vadd.f32 %v631, %v68
    %v636 = vadd.f32 %v632, %v69
    %v637 = vadd.f32 %v633, %v70
    %v638 = vadd.f32 %v634, %v71
    %v639 = vmax.f32 %v635, 0.0
    %v640 = vmax.f32 %v636, 0.0
    %v641 = vmax.f32 %v637, 0.0
    %v642 = vmax.f32 %v638, 0.0
    %643 = vst [vmem:[#allocation8] sm:$0xff] %v639
    %644 = vst [vmem:[#allocation8 + $0x8] sm:$0xff] %v640
    %645 = vst [vmem:[#allocation8 + $0x10] sm:$0xff] %v641
    %646 = vst [vmem:[#allocation8 + $0x18] sm:$0xff] %v642
    // Predicated region
    $region42: #{tpu_custom_call.1} parent=1 // pred_check
      _
    $region43: #{tpu_custom_call.1} parent=1 // pred_check_branch
      %648 = sbr.rel (0) target = $region45
    $region44: #{tpu_custom_call.1} parent=1 // pred_region
      %s650 = ssub.s32 512, 512
      %651 = vsyncadd [#allocation4], %s650
      %s652 = sshll.u32 [#allocation8], 4
      %s653 = int_to_ptr.vmem [resolvable:$true] %s652
      %658 = dma.vmem_to_hbm [thread:$0]  %s653, 512, %s7, [#allocation4], 128, 128, 8
    $region45: #{tpu_custom_call.1} parent=1 // pred_fallthru
      _
    // Predicated region
    $region46: #{tpu_custom_call.1} parent=1 // pred_check
      _
    $region47: #{tpu_custom_call.1} parent=1 // pred_check_branch
      %660 = sbr.rel (0) target = $region49
    $region48: #{tpu_custom_call.1} parent=1 // pred_region
      %661 = dma.done [#allocation4], 512
    $region49: #{tpu_custom_call.1} parent=1 // pred_fallthru
      _
    %662 = vsyncpa [#allocation3], 1
    %663 = vsyncpa [#allocation6], 1
    %664 = vsyncpa [#allocation4], 1

// kernel: tpu_custom_call.1
$region0: #{tpu_custom_call.1}
  #allocation0 [shape = 'u32[]', space=smem, size = 0x4, offset = 0x4, fixed_abs, tag = 'smem constant byte address 0x4 - core index']
  #allocation1 [shape = 'u32[144,128]{1,0:T(1,128)}', space=vmem, size = 0x12000, scoped, tag = 'internal scratch']
  %s0 = inlined_call_operand.hbm [shape: f32[32,128], index: 0, kind: input, shape index: {}]
  %s1 = inlined_call_operand.hbm [shape: f32[384,128], index: 1, kind: input, shape index: {}]
  %s2 = inlined_call_operand.vmem [shape: f32[1,128], index: 2, kind: input, shape index: {}]
  %s3 = inlined_call_operand.vmem [shape: f32[1,128], index: 3, kind: input, shape index: {}]
  %s4 = inlined_call_operand.hbm [shape: f32[384,128], index: 4, kind: input, shape index: {}]
  %s5 = inlined_call_operand.vmem [shape: f32[1,128], index: 5, kind: input, shape index: {}]
  %s6 = inlined_call_operand.vmem [shape: f32[1,128], index: 6, kind: input, shape index: {}]
  %s7 = inlined_call_operand.hbm [shape: f32[32,128], index: 7, kind: output, shape index: {}]
  %s8 = sld [smem:[#allocation0]]
  $region50: #{tpu_custom_call.1} parent=0
    _
  %s10 = ssub.s32 1, %s8
  %s11 = scalar_select 0, %s10, %s8
  $region1: #{tpu_custom_call.1} parent=0
    #allocation2 [shape = 'u8[16384]{0}', space=vmem, size = 0x4000, scoped, tag = 'input window, operand 0, single buffered']
    #allocation3 [shape = 's32[1]{0}', space=sflag, size = 0x4, scoped, tag = 'scoped memory for tpu_custom_call.1']
    #allocation4 [shape = 's32[1]{0}', space=sflag, size = 0x4, scoped, tag = 'scoped memory for tpu_custom_call.1']
    #allocation5 [shape = 'u8[196608]{0}', space=vmem, size = 0x30000, scoped, tag = 'input window, operand 1, single buffered']
    #allocation6 [shape = 's32[1]{0}', space=sflag, size = 0x4, scoped, tag = 'scoped memory for tpu_custom_call.1']
    #allocation7 [shape = 'u8[196608]{0}', space=vmem, size = 0x30000, scoped, tag = 'input window, operand 4, single buffered']
    #allocation8 [shape = 'u8[16384]{0}', space=vmem, size = 0x4000, scoped, tag = 'output window, operand 0, single buffered']
    %12 = vsyncpa [#allocation3], 0
    %13 = vsyncpa [#allocation6], 0
    %14 = vsyncpa [#allocation4], 0
    // Predicated region
    $region2: #{tpu_custom_call.1} parent=1 // pred_check
      _
    $region3: #{tpu_custom_call.1} parent=1 // pred_check_branch
      %16 = sbr.rel (0) target = $region5
    $region4: #{tpu_custom_call.1} parent=1 // pred_region
      %s18 = ssub.s32 512, 512
      %19 = vsyncadd [#allocation3], %s18
      %s20 = sshll.u32 [#allocation2], 4
      %s21 = int_to_ptr.vmem [resolvable:$true] %s20
      %26 = dma.hbm_to_vmem [thread:$0]  %s0, 512, %s21, [#allocation3], 128, 128, 8
    $region5: #{tpu_custom_call.1} parent=1 // pred_fallthru
      _
    // Predicated region
    $region6: #{tpu_custom_call.1} parent=1 // pred_check
      _
    $region7: #{tpu_custom_call.1} parent=1 // pred_check_branch
      %28 = sbr.rel (0) target = $region9
    $region8: #{tpu_custom_call.1} parent=1 // pred_region
      %s30 = ssub.s32 6144, 6144
      %31 = vsyncadd [#allocation6], %s30
      %s32 = sshll.u32 [#allocation5], 4
      %s33 = int_to_ptr.vmem [resolvable:$true] %s32
      %38 = dma.hbm_to_vmem [thread:$0]  %s1, 6144, %s33, [#allocation6], 128, 128, 8
    $region9: #{tpu_custom_call.1} parent=1 // pred_fallthru
      _
    // Predicated region
    $region10: #{tpu_custom_call.1} parent=1 // pred_check
      _
    $region11: #{tpu_custom_call.1} parent=1 // pred_check_branch
      %40 = sbr.rel (0) target = $region13
    $region12: #{tpu_custom_call.1} parent=1 // pred_region
      _
    $region13: #{tpu_custom_call.1} parent=1 // pred_fallthru
      _
    // Predicated region
    $region14: #{tpu_custom_call.1} parent=1 // pred_check
      _
    $region15: #{tpu_custom_call.1} parent=1 // pred_check_branch
      %42 = sbr.rel (0) target = $region17
    $region16: #{tpu_custom_call.1} parent=1 // pred_region
      _
    $region17: #{tpu_custom_call.1} parent=1 // pred_fallthru
      _
    // Predicated region
    $region18: #{tpu_custom_call.1} parent=1 // pred_check
      _
    $region19: #{tpu_custom_call.1} parent=1 // pred_check_branch
      %44 = sbr.rel (0) target = $region21
    $region20: #{tpu_custom_call.1} parent=1 // pred_region
      %s46 = ssub.s32 6144, 6144
      %47 = vsyncadd [#allocation6], %s46
      %s48 = sshll.u32 [#allocation7], 4
      %s49 = int_to_ptr.vmem [resolvable:$true] %s48
      %54 = dma.hbm_to_vmem [thread:$0]  %s4, 6144, %s49, [#allocation6], 128, 128, 8
    $region21: #{tpu_custom_call.1} parent=1 // pred_fallthru
      _
    // Predicated region
    $region22: #{tpu_custom_call.1} parent=1 // pred_check
      _
    $region23: #{tpu_custom_call.1} parent=1 // pred_check_branch
      %56 = sbr.rel (0) target = $region25
    $region24: #{tpu_custom_call.1} parent=1 // pred_region
      _
    $region25: #{tpu_custom_call.1} parent=1 // pred_fallthru
      _
    // Predicated region
    $region26: #{tpu_custom_call.1} parent=1 // pred_check
      _
    $region27: #{tpu_custom_call.1} parent=1 // pred_check_branch
      %58 = sbr.rel (0) target = $region29
    $region28: #{tpu_custom_call.1} parent=1 // pred_region
      _
    $region29: #{tpu_custom_call.1} parent=1 // pred_fallthru
      _
    // Predicated region
    $region30: #{tpu_custom_call.1} parent=1 // pred_check
      _
    $region31: #{tpu_custom_call.1} parent=1 // pred_check_branch
      %60 = sbr.rel (0) target = $region33
    $region32: #{tpu_custom_call.1} parent=1 // pred_region
      %61 = dma.done [#allocation3], 512
    $region33: #{tpu_custom_call.1} parent=1 // pred_fallthru
      _
    // Predicated region
    $region34: #{tpu_custom_call.1} parent=1 // pred_check
      _
    $region35: #{tpu_custom_call.1} parent=1 // pred_check_branch
      %63 = sbr.rel (0) target = $region37
    $region36: #{tpu_custom_call.1} parent=1 // pred_region
      %64 = dma.done [#allocation6], 6144
    $region37: #{tpu_custom_call.1} parent=1 // pred_fallthru
      _
    // Predicated region
    $region38: #{tpu_custom_call.1} parent=1 // pred_check
      _
    $region39: #{tpu_custom_call.1} parent=1 // pred_check_branch
      %66 = sbr.rel (0) target = $region41
    $region40: #{tpu_custom_call.1} parent=1 // pred_region
      %67 = dma.done [#allocation6], 6144
    $region41: #{tpu_custom_call.1} parent=1 // pred_fallthru
      _
    %v68 = vld [vmem:[#allocation2] sm:$0xff]
    %v69 = vld [vmem:[#allocation2 + $0x8] sm:$0xff]
    %v70 = vld [vmem:[#allocation2 + $0x10] sm:$0xff]
    %v71 = vld [vmem:[#allocation2 + $0x18] sm:$0xff]
    %v72 = vlaneseq
    %v73 = vshrl.u32 %v72, 7
    %v74 = vadd.s32 %v73, 8
    %v75 = vadd.s32 %v73, 16
    %v76 = vadd.s32 %v73, 24
    %vm77 = vcmp.eq.s32.totalorder %v73, 0
    %vm78 = vcmp.eq.s32.totalorder %v74, 0
    %vm79 = vcmp.eq.s32.totalorder %v75, 0
    %vm80 = vcmp.eq.s32.totalorder %v76, 0
    %vm81 = vcmp.eq.s32.totalorder %v73, 15
    %vm82 = vcmp.eq.s32.totalorder %v74, 15
    %vm83 = vcmp.eq.s32.totalorder %v75, 15
    %vm84 = vcmp.eq.s32.totalorder %v76, 15
    %vm85 = vcmp.eq.s32.totalorder %v73, 16
    %vm86 = vcmp.eq.s32.totalorder %v74, 16
    %vm87 = vcmp.eq.s32.totalorder %v75, 16
    %vm88 = vcmp.eq.s32.totalorder %v76, 16
    %vm89 = vmor %vm77, %vm85
    %vm90 = vmor %vm78, %vm86
    %vm91 = vmor %vm79, %vm87
    %vm92 = vmor %vm80, %vm88
    %vm93 = vcmp.eq.s32.totalorder %v73, 31
    %vm94 = vcmp.eq.s32.totalorder %v74, 31
    %vm95 = vcmp.eq.s32.totalorder %v75, 31
    %vm96 = vcmp.eq.s32.totalorder %v76, 31
    %vm97 = vmor %vm81, %vm93
    %vm98 = vmor %vm82, %vm94
    %vm99 = vmor %vm83, %vm95
    %vm100 = vmor %vm84, %vm96
    %v101 = vrot.slane %v68, 7
    %v102 = vrot.slane %v69, 7
    %v103 = vrot.slane %v70, 7
    %v104 = vrot.slane %v71, 7
    %vm105 = vcmp.lt.s32.totalorder %v73, 1
    %v106 = vsel %vm105, %v103, %v104
    %v107 = vsel %vm105, %v102, %v103
    %v108 = vsel %vm105, %v101, %v102
    %v109 = vsel %vm105, %v104, %v101
    %v110 = vsel %vm89, 0.0, %v109
    %v111 = vsel %vm90, 0.0, %v108
    %v112 = vsel %vm91, 0.0, %v107
    %v113 = vsel %vm92, 0.0, %v106
    %v114 = vrot.slane %v68, 1
    %v115 = vrot.slane %v69, 1
    %v116 = vrot.slane %v70, 1
    %v117 = vrot.slane %v71, 1
    %vm118 = vcmp.lt.s32.totalorder %v73, 7
    %v119 = vsel %vm118, %v116, %v117
    %v120 = vsel %vm118, %v115, %v116
    %v121 = vsel %vm118, %v114, %v115
    %v122 = vsel %vm118, %v117, %v114
    %v123 = vsel %vm97, 0.0, %v121
    %v124 = vsel %vm98, 0.0, %v120
    %v125 = vsel %vm99, 0.0, %v119
    %v126 = vsel %vm100, 0.0, %v122
    %v127 = vld [vmem:[#allocation5] sm:$0xff]
    %v128 = vld [vmem:[#allocation5 + $0x8] sm:$0xff]
    %v129 = vld [vmem:[#allocation5 + $0x10] sm:$0xff]
    %v130 = vld [vmem:[#allocation5 + $0x18] sm:$0xff]
    %v131 = vld [vmem:[#allocation5 + $0x20] sm:$0xff]
    %v132 = vld [vmem:[#allocation5 + $0x28] sm:$0xff]
    %v133 = vld [vmem:[#allocation5 + $0x30] sm:$0xff]
    %v134 = vld [vmem:[#allocation5 + $0x38] sm:$0xff]
    %v135 = vld [vmem:[#allocation5 + $0x40] sm:$0xff]
    %v136 = vld [vmem:[#allocation5 + $0x48] sm:$0xff]
    %v137 = vld [vmem:[#allocation5 + $0x50] sm:$0xff]
    %v138 = vld [vmem:[#allocation5 + $0x58] sm:$0xff]
    %v139 = vld [vmem:[#allocation5 + $0x60] sm:$0xff]
    %v140 = vld [vmem:[#allocation5 + $0x68] sm:$0xff]
    %v141 = vld [vmem:[#allocation5 + $0x70] sm:$0xff]
    %v142 = vld [vmem:[#allocation5 + $0x78] sm:$0xff]
    %v143 = vld [vmem:[#allocation5 + $0x80] sm:$0xff]
    %v144 = vld [vmem:[#allocation5 + $0x88] sm:$0xff]
    %v145 = vld [vmem:[#allocation5 + $0x90] sm:$0xff]
    %v146 = vld [vmem:[#allocation5 + $0x98] sm:$0xff]
    %v147 = vld [vmem:[#allocation5 + $0xa0] sm:$0xff]
    %v148 = vld [vmem:[#allocation5 + $0xa8] sm:$0xff]
    %v149 = vld [vmem:[#allocation5 + $0xb0] sm:$0xff]
    %v150 = vld [vmem:[#allocation5 + $0xb8] sm:$0xff]
    %v151 = vld [vmem:[#allocation5 + $0xc0] sm:$0xff]
    %v152 = vld [vmem:[#allocation5 + $0xc8] sm:$0xff]
    %v153 = vld [vmem:[#allocation5 + $0xd0] sm:$0xff]
    %v154 = vld [vmem:[#allocation5 + $0xd8] sm:$0xff]
    %v155 = vld [vmem:[#allocation5 + $0xe0] sm:$0xff]
    %v156 = vld [vmem:[#allocation5 + $0xe8] sm:$0xff]
    %v157 = vld [vmem:[#allocation5 + $0xf0] sm:$0xff]
    %v158 = vld [vmem:[#allocation5 + $0xf8] sm:$0xff]
    %v159 = vld [vmem:[#allocation5 + $0x100] sm:$0xff]
    %v160 = vld [vmem:[#allocation5 + $0x108] sm:$0xff]
    %v161 = vld [vmem:[#allocation5 + $0x110] sm:$0xff]
    %v162 = vld [vmem:[#allocation5 + $0x118] sm:$0xff]
    %v163 = vld [vmem:[#allocation5 + $0x120] sm:$0xff]
    %v164 = vld [vmem:[#allocation5 + $0x128] sm:$0xff]
    %v165 = vld [vmem:[#allocation5 + $0x130] sm:$0xff]
    %v166 = vld [vmem:[#allocation5 + $0x138] sm:$0xff]
    %v167 = vld [vmem:[#allocation5 + $0x140] sm:$0xff]
    %v168 = vld [vmem:[#allocation5 + $0x148] sm:$0xff]
    %v169 = vld [vmem:[#allocation5 + $0x150] sm:$0xff]
    %v170 = vld [vmem:[#allocation5 + $0x158] sm:$0xff]
    %v171 = vld [vmem:[#allocation5 + $0x160] sm:$0xff]
    %v172 = vld [vmem:[#allocation5 + $0x168] sm:$0xff]
    %v173 = vld [vmem:[#allocation5 + $0x170] sm:$0xff]
    %v174 = vld [vmem:[#allocation5 + $0x178] sm:$0xff]
    %175 = vmatprep.subr.mxu0 0.0
    %176 = vmatpush1.msra.mxu0 %v127
    %177 = vmatprep.subr.mxu0 0.0
    %178 = vmatpush1.msra.mxu0 %v128
    %179 = vmatprep.subr.mxu0 0.0
    %180 = vmatpush1.msra.mxu0 %v129
    %181 = vmatprep.subr.mxu0 0.0
    %182 = vmatpush1.msra.mxu0 %v130
    %183 = vmatprep.subr.mxu0 0.0
    %184 = vmatpush1.msra.mxu0 %v131
    %185 = vmatprep.subr.mxu0 0.0
    %186 = vmatpush1.msra.mxu0 %v132
    %187 = vmatprep.subr.mxu0 0.0
    %188 = vmatpush1.msra.mxu0 %v133
    %189 = vmatprep.subr.mxu0 0.0
    %190 = vmatpush1.msra.mxu0 %v134
    %191 = vmatprep.subr.mxu0 0.0
    %192 = vmatpush1.msra.mxu0 %v135
    %193 = vmatprep.subr.mxu0 0.0
    %194 = vmatpush1.msra.mxu0 %v136
    %195 = vmatprep.subr.mxu0 0.0
    %196 = vmatpush1.msra.mxu0 %v137
    %197 = vmatprep.subr.mxu0 0.0
    %198 = vmatpush1.msra.mxu0 %v138
    %199 = vmatprep.subr.mxu0 0.0
    %200 = vmatpush1.msra.mxu0 %v139
    %201 = vmatprep.subr.mxu0 0.0
    %202 = vmatpush1.msra.mxu0 %v140
    %203 = vmatprep.subr.mxu0 0.0
    %204 = vmatpush1.msra.mxu0 %v141
    %205 = vmatprep.subr.mxu0 0.0
    %206 = vmatpush1.msra.mxu0 %v142
    %207 = vmatprep.subr.mxu0 0.0
    %208 = vmatpush1.msra.mxu0 %v143
    %209 = vmatprep.subr.mxu0 0.0
    %210 = vmatpush1.msra.mxu0 %v144
    %211 = vmatprep.subr.mxu0 0.0
    %212 = vmatpush1.msra.mxu0 %v145
    %213 = vmatprep.subr.mxu0 0.0
    %214 = vmatpush1.msra.mxu0 %v146
    %215 = vmatprep.subr.mxu0 0.0
    %216 = vmatpush1.msra.mxu0 %v147
    %217 = vmatprep.subr.mxu0 0.0
    %218 = vmatpush1.msra.mxu0 %v148
    %219 = vmatprep.subr.mxu0 0.0
    %220 = vmatpush1.msra.mxu0 %v149
    %221 = vmatprep.subr.mxu0 0.0
    %222 = vmatpush1.msra.mxu0 %v150
    %223 = vmatprep.subr.mxu0 0.0
    %224 = vmatpush1.msra.mxu0 %v151
    %225 = vmatprep.subr.mxu0 0.0
    %226 = vmatpush1.msra.mxu0 %v152
    %227 = vmatprep.subr.mxu0 0.0
    %228 = vmatpush1.msra.mxu0 %v153
    %229 = vmatprep.subr.mxu0 0.0
    %230 = vmatpush1.msra.mxu0 %v154
    %231 = vmatprep.subr.mxu0 0.0
    %232 = vmatpush1.msra.mxu0 %v155
    %233 = vmatprep.subr.mxu0 0.0
    %234 = vmatpush1.msra.mxu0 %v156
    %235 = vmatprep.subr.mxu0 0.0
    %236 = vmatpush1.msra.mxu0 %v157
    %237 = vmatprep.subr.mxu0 0.0
    %238 = vmatpush1.msra.mxu0 %v158
    %239 = vmatprep.mubr.f32.mxu0 %v68
    %240 = vmatmul.mubr.f32.gmra.mrb[0].mxu0 %v110
    %v241 = vpop.f32.mrb[0].mxu0
    %v242 = vadd.f32 0.0, %v241
    %v243 = vpop.f32.mrb[0].mxu0
    %244 = vmatprep.mubr.f32.mxu0 %v69
    %245 = vmatmul.mubr.f32.gmra.mrb[0].mxu0 %v111
    %v246 = vpop.f32.mrb[0].mxu0
    %v247 = vadd.f32 0.0, %v246
    %v248 = vpop.f32.mrb[0].mxu0
    %249 = vmatprep.mubr.f32.mxu0 %v70
    %250 = vmatmul.mubr.f32.gmra.mrb[0].mxu0 %v112
    %v251 = vpop.f32.mrb[0].mxu0
    %v252 = vadd.f32 0.0, %v251
    %v253 = vpop.f32.mrb[0].mxu0
    %254 = vmatprep.mubr.f32.mxu0 %v71
    %255 = vmatmul.mubr.f32.gmra.mrb[0].mxu0 %v113
    %v256 = vpop.f32.mrb[0].mxu0
    %v257 = vadd.f32 0.0, %v256
    %v258 = vpop.f32.mrb[0].mxu0
    %259 = vdwg.mxu0
    %260 = vmatprep.subr.mxu0 0.0
    %261 = vmatpush1.msra.mxu0 %v159
    %262 = vmatprep.subr.mxu0 0.0
    %263 = vmatpush1.msra.mxu0 %v160
    %264 = vmatprep.subr.mxu0 0.0
    %265 = vmatpush1.msra.mxu0 %v161
    %266 = vmatprep.subr.mxu0 0.0
    %267 = vmatpush1.msra.mxu0 %v162
    %268 = vmatprep.subr.mxu0 0.0
    %269 = vmatpush1.msra.mxu0 %v163
    %270 = vmatprep.subr.mxu0 0.0
    %271 = vmatpush1.msra.mxu0 %v164
    %272 = vmatprep.subr.mxu0 0.0
    %273 = vmatpush1.msra.mxu0 %v165
    %274 = vmatprep.subr.mxu0 0.0
    %275 = vmatpush1.msra.mxu0 %v166
    %276 = vmatprep.subr.mxu0 0.0
    %277 = vmatpush1.msra.mxu0 %v167
    %278 = vmatprep.subr.mxu0 0.0
    %279 = vmatpush1.msra.mxu0 %v168
    %280 = vmatprep.subr.mxu0 0.0
    %281 = vmatpush1.msra.mxu0 %v169
    %282 = vmatprep.subr.mxu0 0.0
    %283 = vmatpush1.msra.mxu0 %v170
    %284 = vmatprep.subr.mxu0 0.0
    %285 = vmatpush1.msra.mxu0 %v171
    %286 = vmatprep.subr.mxu0 0.0
    %287 = vmatpush1.msra.mxu0 %v172
    %288 = vmatprep.subr.mxu0 0.0
    %289 = vmatpush1.msra.mxu0 %v173
    %290 = vmatprep.subr.mxu0 0.0
    %291 = vmatpush1.msra.mxu0 %v174
    %292 = vmatprep.subr.mxu0 0.0
    %293 = vmatpush1.msra.mxu0 0.0
    %294 = vmatprep.subr.mxu0 0.0
    %295 = vmatpush1.msra.mxu0 0.0
    %296 = vmatprep.subr.mxu0 0.0
    %297 = vmatpush1.msra.mxu0 0.0
    %298 = vmatprep.subr.mxu0 0.0
    %299 = vmatpush1.msra.mxu0 0.0
    %300 = vmatprep.subr.mxu0 0.0
    %301 = vmatpush1.msra.mxu0 0.0
    %302 = vmatprep.subr.mxu0 0.0
    %303 = vmatpush1.msra.mxu0 0.0
    %304 = vmatprep.subr.mxu0 0.0
    %305 = vmatpush1.msra.mxu0 0.0
    %306 = vmatprep.subr.mxu0 0.0
    %307 = vmatpush1.msra.mxu0 0.0
    %308 = vmatprep.subr.mxu0 0.0
    %309 = vmatpush1.msra.mxu0 0.0
    %310 = vmatprep.subr.mxu0 0.0
    %311 = vmatpush1.msra.mxu0 0.0
    %312 = vmatprep.subr.mxu0 0.0
    %313 = vmatpush1.msra.mxu0 0.0
    %314 = vmatprep.subr.mxu0 0.0
    %315 = vmatpush1.msra.mxu0 0.0
    %316 = vmatprep.subr.mxu0 0.0
    %317 = vmatpush1.msra.mxu0 0.0
    %318 = vmatprep.subr.mxu0 0.0
    %319 = vmatpush1.msra.mxu0 0.0
    %320 = vmatprep.subr.mxu0 0.0
    %321 = vmatpush1.msra.mxu0 0.0
    %322 = vmatprep.subr.mxu0 0.0
    %323 = vmatpush1.msra.mxu0 0.0
    %324 = vmatprep.mubr.f32.mxu0 0.0
    %325 = vmatmul.mubr.f32.gmra.mrb[0].mxu0 %v123
    %v326 = vpop.f32.mrb[0].mxu0
    %v327 = vadd.f32 %v242, %v326
    %v328 = vpop.f32.mrb[0].mxu0
    %329 = vmatprep.mubr.f32.mxu0 0.0
    %330 = vmatmul.mubr.f32.gmra.mrb[0].mxu0 %v124
    %v331 = vpop.f32.mrb[0].mxu0
    %v332 = vadd.f32 %v247, %v331
    %v333 = vpop.f32.mrb[0].mxu0
    %334 = vmatprep.mubr.f32.mxu0 0.0
    %335 = vmatmul.mubr.f32.gmra.mrb[0].mxu0 %v125
    %v336 = vpop.f32.mrb[0].mxu0
    %v337 = vadd.f32 %v252, %v336
    %v338 = vpop.f32.mrb[0].mxu0
    %339 = vmatprep.mubr.f32.mxu0 0.0
    %340 = vmatmul.mubr.f32.gmra.mrb[0].mxu0 %v126
    %v341 = vpop.f32.mrb[0].mxu0
    %v342 = vadd.f32 %v257, %v341
    %v343 = vpop.f32.mrb[0].mxu0
    %344 = vdwg.mxu0
    %v345 = vld [vmem:[%s2] sm:$0x1]
    %v347 = vlaneseq
    %v348 = vshrl.u32 %v347, 7
    %v349 = vsub.s32 0, %v348
    %v350 = vrot.slane %v345, %v349
    %v352 = vmul.f32 %v327, %v350
    %v353 = vmul.f32 %v332, %v350
    %v354 = vmul.f32 %v337, %v350
    %v355 = vmul.f32 %v342, %v350
    %v356 = vld [vmem:[%s3] sm:$0x1]
    %v358 = vlaneseq
    %v359 = vshrl.u32 %v358, 7
    %v360 = vsub.s32 0, %v359
    %v361 = vrot.slane %v356, %v360
    %v363 = vadd.f32 %v352, %v361
    %v364 = vadd.f32 %v353, %v361
    %v365 = vadd.f32 %v354, %v361
    %v366 = vadd.f32 %v355, %v361
    %v367 = vmax.f32 %v363, 0.0
    %v368 = vmax.f32 %v364, 0.0
    %v369 = vmax.f32 %v365, 0.0
    %v370 = vmax.f32 %v366, 0.0
    %v371 = vrot.slane %v367, 7
    %v372 = vrot.slane %v368, 7
    %v373 = vrot.slane %v369, 7
    %v374 = vrot.slane %v370, 7
    %v375 = vsel %vm105, %v373, %v374
    %v376 = vsel %vm105, %v372, %v373
    %v377 = vsel %vm105, %v371, %v372
    %v378 = vsel %vm105, %v374, %v371
    %v379 = vsel %vm89, 0.0, %v378
    %v380 = vsel %vm90, 0.0, %v377
    %v381 = vsel %vm91, 0.0, %v376
    %v382 = vsel %vm92, 0.0, %v375
    %v383 = vrot.slane %v367, 1
    %v384 = vrot.slane %v368, 1
    %v385 = vrot.slane %v369, 1
    %v386 = vrot.slane %v370, 1
    %v387 = vsel %vm118, %v385, %v386
    %v388 = vsel %vm118, %v384, %v385
    %v389 = vsel %vm118, %v383, %v384
    %v390 = vsel %vm118, %v386, %v383
    %v391 = vsel %vm97, 0.0, %v389
    %v392 = vsel %vm98, 0.0, %v388
    %v393 = vsel %vm99, 0.0, %v387
    %v394 = vsel %vm100, 0.0, %v390
    %v395 = vld [vmem:[#allocation7] sm:$0xff]
    %v396 = vld [vmem:[#allocation7 + $0x8] sm:$0xff]
    %v397 = vld [vmem:[#allocation7 + $0x10] sm:$0xff]
    %v398 = vld [vmem:[#allocation7 + $0x18] sm:$0xff]
    %v399 = vld [vmem:[#allocation7 + $0x20] sm:$0xff]
    %v400 = vld [vmem:[#allocation7 + $0x28] sm:$0xff]
    %v401 = vld [vmem:[#allocation7 + $0x30] sm:$0xff]
    %v402 = vld [vmem:[#allocation7 + $0x38] sm:$0xff]
    %v403 = vld [vmem:[#allocation7 + $0x40] sm:$0xff]
    %v404 = vld [vmem:[#allocation7 + $0x48] sm:$0xff]
    %v405 = vld [vmem:[#allocation7 + $0x50] sm:$0xff]
    %v406 = vld [vmem:[#allocation7 + $0x58] sm:$0xff]
    %v407 = vld [vmem:[#allocation7 + $0x60] sm:$0xff]
    %v408 = vld [vmem:[#allocation7 + $0x68] sm:$0xff]
    %v409 = vld [vmem:[#allocation7 + $0x70] sm:$0xff]
    %v410 = vld [vmem:[#allocation7 + $0x78] sm:$0xff]
    %v411 = vld [vmem:[#allocation7 + $0x80] sm:$0xff]
    %v412 = vld [vmem:[#allocation7 + $0x88] sm:$0xff]
    %v413 = vld [vmem:[#allocation7 + $0x90] sm:$0xff]
    %v414 = vld [vmem:[#allocation7 + $0x98] sm:$0xff]
    %v415 = vld [vmem:[#allocation7 + $0xa0] sm:$0xff]
    %v416 = vld [vmem:[#allocation7 + $0xa8] sm:$0xff]
    %v417 = vld [vmem:[#allocation7 + $0xb0] sm:$0xff]
    %v418 = vld [vmem:[#allocation7 + $0xb8] sm:$0xff]
    %v419 = vld [vmem:[#allocation7 + $0xc0] sm:$0xff]
    %v420 = vld [vmem:[#allocation7 + $0xc8] sm:$0xff]
    %v421 = vld [vmem:[#allocation7 + $0xd0] sm:$0xff]
    %v422 = vld [vmem:[#allocation7 + $0xd8] sm:$0xff]
    %v423 = vld [vmem:[#allocation7 + $0xe0] sm:$0xff]
    %v424 = vld [vmem:[#allocation7 + $0xe8] sm:$0xff]
    %v425 = vld [vmem:[#allocation7 + $0xf0] sm:$0xff]
    %v426 = vld [vmem:[#allocation7 + $0xf8] sm:$0xff]
    %v427 = vld [vmem:[#allocation7 + $0x100] sm:$0xff]
    %v428 = vld [vmem:[#allocation7 + $0x108] sm:$0xff]
    %v429 = vld [vmem:[#allocation7 + $0x110] sm:$0xff]
    %v430 = vld [vmem:[#allocation7 + $0x118] sm:$0xff]
    %v431 = vld [vmem:[#allocation7 + $0x120] sm:$0xff]
    %v432 = vld [vmem:[#allocation7 + $0x128] sm:$0xff]
    %v433 = vld [vmem:[#allocation7 + $0x130] sm:$0xff]
    %v434 = vld [vmem:[#allocation7 + $0x138] sm:$0xff]
    %v435 = vld [vmem:[#allocation7 + $0x140] sm:$0xff]
    %v436 = vld [vmem:[#allocation7 + $0x148] sm:$0xff]
    %v437 = vld [vmem:[#allocation7 + $0x150] sm:$0xff]
    %v438 = vld [vmem:[#allocation7 + $0x158] sm:$0xff]
    %v439 = vld [vmem:[#allocation7 + $0x160] sm:$0xff]
    %v440 = vld [vmem:[#allocation7 + $0x168] sm:$0xff]
    %v441 = vld [vmem:[#allocation7 + $0x170] sm:$0xff]
    %v442 = vld [vmem:[#allocation7 + $0x178] sm:$0xff]
    %443 = vmatprep.subr.mxu0 0.0
    %444 = vmatpush1.msra.mxu0 %v395
    %445 = vmatprep.subr.mxu0 0.0
    %446 = vmatpush1.msra.mxu0 %v396
    %447 = vmatprep.subr.mxu0 0.0
    %448 = vmatpush1.msra.mxu0 %v397
    %449 = vmatprep.subr.mxu0 0.0
    %450 = vmatpush1.msra.mxu0 %v398
    %451 = vmatprep.subr.mxu0 0.0
    %452 = vmatpush1.msra.mxu0 %v399
    %453 = vmatprep.subr.mxu0 0.0
    %454 = vmatpush1.msra.mxu0 %v400
    %455 = vmatprep.subr.mxu0 0.0
    %456 = vmatpush1.msra.mxu0 %v401
    %457 = vmatprep.subr.mxu0 0.0
    %458 = vmatpush1.msra.mxu0 %v402
    %459 = vmatprep.subr.mxu0 0.0
    %460 = vmatpush1.msra.mxu0 %v403
    %461 = vmatprep.subr.mxu0 0.0
    %462 = vmatpush1.msra.mxu0 %v404
    %463 = vmatprep.subr.mxu0 0.0
    %464 = vmatpush1.msra.mxu0 %v405
    %465 = vmatprep.subr.mxu0 0.0
    %466 = vmatpush1.msra.mxu0 %v406
    %467 = vmatprep.subr.mxu0 0.0
    %468 = vmatpush1.msra.mxu0 %v407
    %469 = vmatprep.subr.mxu0 0.0
    %470 = vmatpush1.msra.mxu0 %v408
    %471 = vmatprep.subr.mxu0 0.0
    %472 = vmatpush1.msra.mxu0 %v409
    %473 = vmatprep.subr.mxu0 0.0
    %474 = vmatpush1.msra.mxu0 %v410
    %475 = vmatprep.subr.mxu0 0.0
    %476 = vmatpush1.msra.mxu0 %v411
    %477 = vmatprep.subr.mxu0 0.0
    %478 = vmatpush1.msra.mxu0 %v412
    %479 = vmatprep.subr.mxu0 0.0
    %480 = vmatpush1.msra.mxu0 %v413
    %481 = vmatprep.subr.mxu0 0.0
    %482 = vmatpush1.msra.mxu0 %v414
    %483 = vmatprep.subr.mxu0 0.0
    %484 = vmatpush1.msra.mxu0 %v415
    %485 = vmatprep.subr.mxu0 0.0
    %486 = vmatpush1.msra.mxu0 %v416
    %487 = vmatprep.subr.mxu0 0.0
    %488 = vmatpush1.msra.mxu0 %v417
    %489 = vmatprep.subr.mxu0 0.0
    %490 = vmatpush1.msra.mxu0 %v418
    %491 = vmatprep.subr.mxu0 0.0
    %492 = vmatpush1.msra.mxu0 %v419
    %493 = vmatprep.subr.mxu0 0.0
    %494 = vmatpush1.msra.mxu0 %v420
    %495 = vmatprep.subr.mxu0 0.0
    %496 = vmatpush1.msra.mxu0 %v421
    %497 = vmatprep.subr.mxu0 0.0
    %498 = vmatpush1.msra.mxu0 %v422
    %499 = vmatprep.subr.mxu0 0.0
    %500 = vmatpush1.msra.mxu0 %v423
    %501 = vmatprep.subr.mxu0 0.0
    %502 = vmatpush1.msra.mxu0 %v424
    %503 = vmatprep.subr.mxu0 0.0
    %504 = vmatpush1.msra.mxu0 %v425
    %505 = vmatprep.subr.mxu0 0.0
    %506 = vmatpush1.msra.mxu0 %v426
    %507 = vmatprep.mubr.f32.mxu0 %v367
    %508 = vmatmul.mubr.f32.gmra.mrb[0].mxu0 %v379
    %v509 = vpop.f32.mrb[0].mxu0
    %v510 = vadd.f32 0.0, %v509
    %v511 = vpop.f32.mrb[0].mxu0
    %512 = vmatprep.mubr.f32.mxu0 %v368
    %513 = vmatmul.mubr.f32.gmra.mrb[0].mxu0 %v380
    %v514 = vpop.f32.mrb[0].mxu0
    %v515 = vadd.f32 0.0, %v514
    %v516 = vpop.f32.mrb[0].mxu0
    %517 = vmatprep.mubr.f32.mxu0 %v369
    %518 = vmatmul.mubr.f32.gmra.mrb[0].mxu0 %v381
    %v519 = vpop.f32.mrb[0].mxu0
    %v520 = vadd.f32 0.0, %v519
    %v521 = vpop.f32.mrb[0].mxu0
    %522 = vmatprep.mubr.f32.mxu0 %v370
    %523 = vmatmul.mubr.f32.gmra.mrb[0].mxu0 %v382
    %v524 = vpop.f32.mrb[0].mxu0
    %v525 = vadd.f32 0.0, %v524
    %v526 = vpop.f32.mrb[0].mxu0
    %527 = vdwg.mxu0
    %528 = vmatprep.subr.mxu0 0.0
    %529 = vmatpush1.msra.mxu0 %v427
    %530 = vmatprep.subr.mxu0 0.0
    %531 = vmatpush1.msra.mxu0 %v428
    %532 = vmatprep.subr.mxu0 0.0
    %533 = vmatpush1.msra.mxu0 %v429
    %534 = vmatprep.subr.mxu0 0.0
    %535 = vmatpush1.msra.mxu0 %v430
    %536 = vmatprep.subr.mxu0 0.0
    %537 = vmatpush1.msra.mxu0 %v431
    %538 = vmatprep.subr.mxu0 0.0
    %539 = vmatpush1.msra.mxu0 %v432
    %540 = vmatprep.subr.mxu0 0.0
    %541 = vmatpush1.msra.mxu0 %v433
    %542 = vmatprep.subr.mxu0 0.0
    %543 = vmatpush1.msra.mxu0 %v434
    %544 = vmatprep.subr.mxu0 0.0
    %545 = vmatpush1.msra.mxu0 %v435
    %546 = vmatprep.subr.mxu0 0.0
    %547 = vmatpush1.msra.mxu0 %v436
    %548 = vmatprep.subr.mxu0 0.0
    %549 = vmatpush1.msra.mxu0 %v437
    %550 = vmatprep.subr.mxu0 0.0
    %551 = vmatpush1.msra.mxu0 %v438
    %552 = vmatprep.subr.mxu0 0.0
    %553 = vmatpush1.msra.mxu0 %v439
    %554 = vmatprep.subr.mxu0 0.0
    %555 = vmatpush1.msra.mxu0 %v440
    %556 = vmatprep.subr.mxu0 0.0
    %557 = vmatpush1.msra.mxu0 %v441
    %558 = vmatprep.subr.mxu0 0.0
    %559 = vmatpush1.msra.mxu0 %v442
    %560 = vmatprep.subr.mxu0 0.0
    %561 = vmatpush1.msra.mxu0 0.0
    %562 = vmatprep.subr.mxu0 0.0
    %563 = vmatpush1.msra.mxu0 0.0
    %564 = vmatprep.subr.mxu0 0.0
    %565 = vmatpush1.msra.mxu0 0.0
    %566 = vmatprep.subr.mxu0 0.0
    %567 = vmatpush1.msra.mxu0 0.0
    %568 = vmatprep.subr.mxu0 0.0
    %569 = vmatpush1.msra.mxu0 0.0
    %570 = vmatprep.subr.mxu0 0.0
    %571 = vmatpush1.msra.mxu0 0.0
    %572 = vmatprep.subr.mxu0 0.0
    %573 = vmatpush1.msra.mxu0 0.0
    %574 = vmatprep.subr.mxu0 0.0
    %575 = vmatpush1.msra.mxu0 0.0
    %576 = vmatprep.subr.mxu0 0.0
    %577 = vmatpush1.msra.mxu0 0.0
    %578 = vmatprep.subr.mxu0 0.0
    %579 = vmatpush1.msra.mxu0 0.0
    %580 = vmatprep.subr.mxu0 0.0
    %581 = vmatpush1.msra.mxu0 0.0
    %582 = vmatprep.subr.mxu0 0.0
    %583 = vmatpush1.msra.mxu0 0.0
    %584 = vmatprep.subr.mxu0 0.0
    %585 = vmatpush1.msra.mxu0 0.0
    %586 = vmatprep.subr.mxu0 0.0
    %587 = vmatpush1.msra.mxu0 0.0
    %588 = vmatprep.subr.mxu0 0.0
    %589 = vmatpush1.msra.mxu0 0.0
    %590 = vmatprep.subr.mxu0 0.0
    %591 = vmatpush1.msra.mxu0 0.0
    %592 = vmatprep.mubr.f32.mxu0 0.0
    %593 = vmatmul.mubr.f32.gmra.mrb[0].mxu0 %v391
    %v594 = vpop.f32.mrb[0].mxu0
    %v595 = vadd.f32 %v510, %v594
    %v596 = vpop.f32.mrb[0].mxu0
    %597 = vmatprep.mubr.f32.mxu0 0.0
    %598 = vmatmul.mubr.f32.gmra.mrb[0].mxu0 %v392
    %v599 = vpop.f32.mrb[0].mxu0
    %v600 = vadd.f32 %v515, %v599
    %v601 = vpop.f32.mrb[0].mxu0
    %602 = vmatprep.mubr.f32.mxu0 0.0
    %603 = vmatmul.mubr.f32.gmra.mrb[0].mxu0 %v393
    %v604 = vpop.f32.mrb[0].mxu0
    %v605 = vadd.f32 %v520, %v604
    %v606 = vpop.f32.mrb[0].mxu0
    %607 = vmatprep.mubr.f32.mxu0 0.0
    %608 = vmatmul.mubr.f32.gmra.mrb[0].mxu0 %v394
    %v609 = vpop.f32.mrb[0].mxu0
    %v610 = vadd.f32 %v525, %v609
    %v611 = vpop.f32.mrb[0].mxu0
    %612 = vdwg.mxu0
    %v613 = vld [vmem:[%s5] sm:$0x1]
    %v615 = vlaneseq
    %v616 = vshrl.u32 %v615, 7
    %v617 = vsub.s32 0, %v616
    %v618 = vrot.slane %v613, %v617
    %v620 = vmul.f32 %v595, %v618
    %v621 = vmul.f32 %v600, %v618
    %v622 = vmul.f32 %v605, %v618
    %v623 = vmul.f32 %v610, %v618
    %v624 = vld [vmem:[%s6] sm:$0x1]
    %v626 = vlaneseq
    %v627 = vshrl.u32 %v626, 7
    %v628 = vsub.s32 0, %v627
    %v629 = vrot.slane %v624, %v628
    %v631 = vadd.f32 %v620, %v629
    %v632 = vadd.f32 %v621, %v629
    %v633 = vadd.f32 %v622, %v629
    %v634 = vadd.f32 %v623, %v629
    %v635 = vadd.f32 %v631, %v68
    %v636 = vadd.f32 %v632, %v69
    %v637 = vadd.f32 %v633, %v70
    %v638 = vadd.f32 %v634, %v71
    %v639 = vmax.f32 %v635, 0.0
    %v640 = vmax.f32 %v636, 0.0
    %v641 = vmax.f32 %v637, 0.0
    %v642 = vmax.f32 %v638, 0.0
    %643 = vst [vmem:[#allocation8] sm:$0xff] %v639
    %644 = vst [vmem:[#allocation8 + $0x8] sm:$0xff] %v640
    %645 = vst [vmem:[#allocation8 + $0x10] sm:$0xff] %v641
    %646 = vst [vmem:[#allocation8 + $0x18] sm:$0xff] %v642
    // Predicated region
    $region42: #{tpu_custom_call.1} parent=1 // pred_check
      _
    $region43: #{tpu_custom_call.1} parent=1 // pred_check_branch
      %648 = sbr.rel (0) target = $region45
    $region44: #{tpu_custom_call.1} parent=1 // pred_region
      %s650 = ssub.s32 512, 512
      %651 = vsyncadd [#allocation4], %s650
      %s652 = sshll.u32 [#allocation8], 4
      %s653 = int_to_ptr.vmem [resolvable:$true] %s652
      %658 = dma.vmem_to_hbm [thread:$0]  %s653, 512, %s7, [#allocation4], 128, 128, 8
    $region45: #{tpu_custom_call.1} parent=1 // pred_fallthru
      _
    // Predicated region
    $region46: #{tpu_custom_call.1} parent=1 // pred_check
      _
    $region47: #{tpu_custom_call.1} parent=1 // pred_check_branch
      %660 = sbr.rel (0) target = $region49
    $region48: #{tpu_custom_call.1} parent=1 // pred_region
      %661 = dma.done [#allocation4], 512
    $region49: #{tpu_custom_call.1} parent=1 // pred_fallthru
      _
    %662 = vsyncpa [#allocation3], 1
    %663 = vsyncpa [#allocation6], 1
    %664 = vsyncpa [#allocation4], 1

</llo_original>
